<compile_context>
chip_gen: v6e
topology: v6e:2x2x1
jax: 0.10.0
libtpu: 0.0.40
codegen_flags: <defaults>
</compile_context>

<pallas_src>
import jax
import jax.numpy as jnp
import numpy as np
from jax.experimental import pallas as pl
from jax.experimental.pallas import tpu as pltpu

H = 32           # hidden_size
K = 4            # conv kernel_size
NUM_LABELS = 3
B = 2            # batch
L = 16           # sequence length
LO = L - K + 1   # conv output length = 13
EPS = 1e-5
INV_SQRT2 = 0.7071067811865476

# ---------------------------------------------------------------------------
# Packed-parameter slab layout: one (272, 128) f32 array, brought in by ONE DMA.
# Static row/col offsets used inside the kernel.
# ---------------------------------------------------------------------------
R_WCONV = 0                   # (K*H, H)  rows [0,128)   cols [0,H)
R_WIH   = R_WCONV + K * H     # (H, 3H)   rows [128,160) cols [0,3H)
R_WHH   = R_WIH + H           # (H, 3H)   rows [160,192)
R_W1    = R_WHH + H           # (H, H)    rows [192,224) cols [0,H)
R_W2    = R_W1 + H            # (H, NL)   rows [224,256) cols [0,NL)
R_GAMMA = R_W2 + H            # 256  (one vector per row below)
R_BETA  = R_GAMMA + 1
R_BCONV = R_BETA + 1
R_BIH   = R_BCONV + 1
R_BHH   = R_BIH + 1
R_B1    = R_BHH + 1
R_GLN   = R_B1 + 1
R_BLN   = R_GLN + 1
R_B2    = R_BLN + 1           # 264
SLAB_ROWS = 272               # padded up to a multiple of 8 sublanes
SLAB_COLS = 128               # one lane tile


def _erf(x):
    # Abramowitz & Stegun 7.1.26 rational approximation (max abs err ~1.5e-7),
    # so exact (erf-based) GELU lowers with only exp / mul / add on the VPU+EUP.
    a1, a2, a3, a4, a5 = 0.254829592, -0.284496736, 1.421413741, -1.453152027, 1.061405429
    p = 0.3275911
    s = jnp.where(x >= 0.0, 1.0, -1.0)
    xa = jnp.abs(x)
    t = 1.0 / (1.0 + p * xa)
    poly = ((((a5 * t + a4) * t + a3) * t + a2) * t + a1) * t
    return s * (1.0 - poly * jnp.exp(-xa * xa))


# ---------------------------------------------------------------------------
# Fused kernel: BN(batch stats, folded) -> Conv1d(im2col) -> ReLU -> GRU -> head
# x_ref: (L*B, H) time-major (row = l*B + b); p_ref: (272, 128) packed params.
# ---------------------------------------------------------------------------
def hybrid_kernel(x_ref, p_ref, out_ref, gi_scr):
    # ---- BatchNorm1d (training-mode batch stats) folded into scale/shift ----
    gamma = p_ref[R_GAMMA:R_GAMMA + 1, 0:H]            # (1, H)
    beta = p_ref[R_BETA:R_BETA + 1, 0:H]
    x = x_ref[...]                                     # (L*B, H)
    mean = jnp.mean(x, axis=0, keepdims=True)          # (1, H) over all (b, l)
    var = jnp.mean((x - mean) ** 2, axis=0, keepdims=True)   # biased variance
    scale = gamma * jax.lax.rsqrt(var + EPS)
    shift = beta - mean * scale
    xn = x * scale + shift                             # (L*B, H)

    # ---- Conv1d as ONE time-major im2col matmul: (LO*B, K*H) @ (K*H, H) ----
    # Row t*B + b of the patch slab = [xn[b,t] | xn[b,t+1] | ... | xn[b,t+K-1]],
    # built from K contiguous sublane slices (offsets k*B) + one lane concat.
    cols = [xn[k * B:k * B + LO * B, :] for k in range(K)]    # each (LO*B, H)
    patches = jnp.concatenate(cols, axis=-1)                  # (LO*B, K*H)
    w_conv = p_ref[R_WCONV:R_WCONV + K * H, 0:H]              # (K*H, H)
    b_conv = p_ref[R_BCONV:R_BCONV + 1, 0:H]
    conv = jnp.dot(patches, w_conv, preferred_element_type=jnp.float32) + b_conv
    conv = jnp.maximum(conv, 0.0)                             # ReLU, (LO*B, H)

    # ---- GRU: input projection hoisted out of the recurrence, time-major ----
    w_ih = p_ref[R_WIH:R_WIH + H, 0:3 * H]                    # (H, 3H)
    b_ih = p_ref[R_BIH:R_BIH + 1, 0:3 * H]
    gi_scr[...] = jnp.dot(conv, w_ih, preferred_element_type=jnp.float32) + b_ih  # (LO*B, 3H)

    w_hh = p_ref[R_WHH:R_WHH + H, 0:3 * H]                    # stays in vregs across the loop
    b_hh = p_ref[R_BHH:R_BHH + 1, 0:3 * H]

    # TODO(synk): pltpu.matmul_push_rhs/acc_lhs/pop could keep W_hh stationary in the MXU
    # weight registers across the 13 steps; skipped here for lowering-robustness.
    def gru_step(t, h):
        r0 = pl.multiple_of(t * B, B)
        gi = gi_scr[pl.ds(r0, B), :]                          # (B, 3H), contiguous rows
        gh = jnp.dot(h, w_hh, preferred_element_type=jnp.float32) + b_hh
        rz = jax.nn.sigmoid(gi[:, :2 * H] + gh[:, :2 * H])    # one EUP pass for r|z
        r = rz[:, :H]
        z = rz[:, H:]
        n = jnp.tanh(gi[:, 2 * H:] + r * gh[:, 2 * H:])
        return (1.0 - z) * n + z * h

    h = jax.lax.fori_loop(0, LO, gru_step, jnp.zeros((B, H), jnp.float32), unroll=True)

    # ---- Prediction head: Linear -> LayerNorm -> GELU(exact erf) -> Linear ----
    w1 = p_ref[R_W1:R_W1 + H, 0:H]
    b1 = p_ref[R_B1:R_B1 + 1, 0:H]
    g_ln = p_ref[R_GLN:R_GLN + 1, 0:H]
    b_ln = p_ref[R_BLN:R_BLN + 1, 0:H]
    w2 = p_ref[R_W2:R_W2 + H, 0:NUM_LABELS]
    b2 = p_ref[R_B2:R_B2 + 1, 0:NUM_LABELS]

    y = jnp.dot(h, w1, preferred_element_type=jnp.float32) + b1
    mu = jnp.mean(y, axis=-1, keepdims=True)
    v = jnp.mean((y - mu) ** 2, axis=-1, keepdims=True)
    yn = (y - mu) * jax.lax.rsqrt(v + EPS) * g_ln + b_ln
    ge = 0.5 * yn * (1.0 + _erf(yn * INV_SQRT2))
    out_ref[...] = jnp.dot(ge, w2, preferred_element_type=jnp.float32) + b2


# ---------------------------------------------------------------------------
# Host-side parameter packing (done once) and kernel wrapper
# ---------------------------------------------------------------------------
def pack_param_slab(p):
    slab = jnp.zeros((SLAB_ROWS, SLAB_COLS), jnp.float32)
    slab = slab.at[R_WCONV:R_WCONV + K * H, :H].set(p["w_conv"].reshape(K * H, H))
    slab = slab.at[R_WIH:R_WIH + H, :3 * H].set(p["w_ih"])
    slab = slab.at[R_WHH:R_WHH + H, :3 * H].set(p["w_hh"])
    slab = slab.at[R_W1:R_W1 + H, :H].set(p["w1"])
    slab = slab.at[R_W2:R_W2 + H, :NUM_LABELS].set(p["w2"])
    slab = slab.at[R_GAMMA, :H].set(p["gamma_bn"])
    slab = slab.at[R_BETA, :H].set(p["beta_bn"])
    slab = slab.at[R_BCONV, :H].set(p["b_conv"])
    slab = slab.at[R_BIH, :3 * H].set(p["b_ih"])
    slab = slab.at[R_BHH, :3 * H].set(p["b_hh"])
    slab = slab.at[R_B1, :H].set(p["b1"])
    slab = slab.at[R_GLN, :H].set(p["g_ln"])
    slab = slab.at[R_BLN, :H].set(p["b_ln"])
    slab = slab.at[R_B2, :NUM_LABELS].set(p["b2"])
    return slab


@jax.jit
def hybrid_forward(x, param_slab):
    # Layout plumbing only: present x as a time-major (L*B, H) slab (row = l*B + b) so the
    # im2col slab / conv / GRU projection are time-major and per-step gi reads are contiguous.
    x_tm = jnp.transpose(x, (1, 0, 2)).reshape(L * B, H)
    return pl.pallas_call(
        hybrid_kernel,
        out_shape=jax.ShapeDtypeStruct((B, NUM_LABELS), jnp.float32),
        grid=(1,),
        in_specs=[
            pl.BlockSpec((L * B, H), lambda i: (0, 0)),
            pl.BlockSpec((SLAB_ROWS, SLAB_COLS), lambda i: (0, 0)),
        ],
        out_specs=pl.BlockSpec((B, NUM_LABELS), lambda i: (0, 0)),
        scratch_shapes=[pltpu.VMEM((LO * B, 3 * H), jnp.float32)],
        compiler_params=pltpu.CompilerParams(vmem_limit_bytes=4 * 1024 * 1024),
    )(x_tm, param_slab)


# ---------------------------------------------------------------------------
# Pure-JAX reference (mirrors PyTorch HybridModel.forward)
# ---------------------------------------------------------------------------
def reference_forward(x, p):
    mean = jnp.mean(x, axis=(0, 1))
    var = jnp.mean((x - mean) ** 2, axis=(0, 1))
    xn = (x - mean) / jnp.sqrt(var + EPS) * p["gamma_bn"] + p["beta_bn"]
    lo = x.shape[1] - K + 1
    y = jnp.zeros((x.shape[0], lo, H), jnp.float32) + p["b_conv"]
    for k in range(K):
        y = y + jnp.einsum("bli,io->blo", xn[:, k:k + lo, :], p["w_conv"][k])
    y = jnp.maximum(y, 0.0)
    h = jnp.zeros((x.shape[0], H), jnp.float32)
    for t in range(lo):
        xt = y[:, t, :]
        gi = xt @ p["w_ih"] + p["b_ih"]
        gh = h @ p["w_hh"] + p["b_hh"]
        r = jax.nn.sigmoid(gi[:, :H] + gh[:, :H])
        z = jax.nn.sigmoid(gi[:, H:2 * H] + gh[:, H:2 * H])
        n = jnp.tanh(gi[:, 2 * H:] + r * gh[:, 2 * H:])
        h = (1.0 - z) * n + z * h
    y1 = h @ p["w1"] + p["b1"]
    mu = jnp.mean(y1, axis=-1, keepdims=True)
    v = jnp.mean((y1 - mu) ** 2, axis=-1, keepdims=True)
    yn = (y1 - mu) / jnp.sqrt(v + EPS) * p["g_ln"] + p["b_ln"]
    ge = 0.5 * yn * (1.0 + jax.scipy.special.erf(yn / jnp.sqrt(2.0)))
    return ge @ p["w2"] + p["b2"]


if __name__ == "__main__":
    key = jax.random.PRNGKey(0)
    keys = jax.random.split(key, 16)
    scale = 1.0 / jnp.sqrt(jnp.float32(H))

    params = {
        # BatchNorm1d affine params
        "gamma_bn": 1.0 + 0.1 * jax.random.normal(keys[0], (H,), jnp.float32),
        "beta_bn": 0.1 * jax.random.normal(keys[1], (H,), jnp.float32),
        # Conv1d weight stored as (K, H_in, H_out) == PyTorch weight (out,in,k) transposed
        "w_conv": scale * jax.random.normal(keys[2], (K, H, H), jnp.float32),
        "b_conv": scale * jax.random.normal(keys[3], (H,), jnp.float32),
        # GRU weights stored (H, 3H) with gate column order [r | z | n] (= PyTorch W_ih.T)
        "w_ih": scale * jax.random.normal(keys[4], (H, 3 * H), jnp.float32),
        "w_hh": scale * jax.random.normal(keys[5], (H, 3 * H), jnp.float32),
        "b_ih": scale * jax.random.normal(keys[6], (3 * H,), jnp.float32),
        "b_hh": scale * jax.random.normal(keys[7], (3 * H,), jnp.float32),
        # prediction head
        "w1": scale * jax.random.normal(keys[8], (H, H), jnp.float32),
        "b1": scale * jax.random.normal(keys[9], (H,), jnp.float32),
        "g_ln": 1.0 + 0.1 * jax.random.normal(keys[10], (H,), jnp.float32),
        "b_ln": 0.1 * jax.random.normal(keys[11], (H,), jnp.float32),
        "w2": scale * jax.random.normal(keys[12], (H, NUM_LABELS), jnp.float32),
        "b2": scale * jax.random.normal(keys[13], (NUM_LABELS,), jnp.float32),
    }

    x = jax.random.normal(keys[14], (B, L, H), jnp.float32)
    param_slab = jax.block_until_ready(pack_param_slab(params))   # packed once on the host

    out = jax.block_until_ready(hybrid_forward(x, param_slab))
    assert out.shape == (B, NUM_LABELS)

    ref = jax.block_until_ready(reference_forward(x, params))
    np.testing.assert_allclose(np.asarray(out), np.asarray(ref), rtol=1e-4, atol=1e-4)

    print("KERNEL_OK")
</pallas_src>

<mosaic_0001>
module attributes {stable_mosaic.version = 11 : i64} {
  func.func @hybrid_kernel(%arg0: i32, %arg1: memref<32x32xf32, #tpu.memory_space<vmem>>, %arg2: memref<272x128xf32, #tpu.memory_space<vmem>>, %arg3: memref<2x3xf32, #tpu.memory_space<vmem>>, %arg4: memref<26x96xf32, #tpu.memory_space<vmem>>) attributes {dimension_semantics = [#tpu.dimension_semantics<arbitrary>], iteration_bounds = array<i64: 1>, scalar_prefetch = 0 : i64, scratch_operands = 1 : i64, tpu.core_type = #tpu.core_type<tc>, window_params = [{pipeline_mode = #tpu.pipeline_mode<synchronous>, transform_indices = @transform_0, window_bounds = array<i64: 32, 32>}, {pipeline_mode = #tpu.pipeline_mode<synchronous>, transform_indices = @transform_1, window_bounds = array<i64: 272, 128>}, {pipeline_mode = #tpu.pipeline_mode<synchronous>, transform_indices = @transform_2, window_bounds = array<i64: 2, 3>}]} {
    %c256 = arith.constant 256 : index
    %c0 = arith.constant 0 : index
    %0 = vector.load %arg2[%c256, %c0] : memref<272x128xf32, #tpu.memory_space<vmem>>, vector<1x32xf32>
    %c257 = arith.constant 257 : index
    %c0_0 = arith.constant 0 : index
    %1 = vector.load %arg2[%c257, %c0_0] : memref<272x128xf32, #tpu.memory_space<vmem>>, vector<1x32xf32>
    %c0_1 = arith.constant 0 : index
    %c0_2 = arith.constant 0 : index
    %2 = vector.load %arg1[%c0_1, %c0_2] : memref<32x32xf32, #tpu.memory_space<vmem>>, vector<32x32xf32>
    %cst = arith.constant dense<0.000000e+00> : vector<32xf32>
    %3 = vector.multi_reduction <add>, %2, %cst [0] : vector<32x32xf32> to vector<32xf32>
    %4 = vector.shape_cast %3 : vector<32xf32> to vector<1x32xf32>
    %cst_3 = arith.constant 3.200000e+01 : f32
    %5 = vector.broadcast %cst_3 : f32 to vector<1x32xf32>
    %6 = arith.divf %4, %5 : vector<1x32xf32>
    %7 = vector.broadcast %6 : vector<1x32xf32> to vector<32x32xf32>
    %8 = arith.subf %2, %7 : vector<32x32xf32>
    %9 = arith.mulf %8, %8 : vector<32x32xf32>
    %cst_4 = arith.constant dense<0.000000e+00> : vector<32xf32>
    %10 = vector.multi_reduction <add>, %9, %cst_4 [0] : vector<32x32xf32> to vector<32xf32>
    %11 = vector.shape_cast %10 : vector<32xf32> to vector<1x32xf32>
    %cst_5 = arith.constant 3.200000e+01 : f32
    %12 = vector.broadcast %cst_5 : f32 to vector<1x32xf32>
    %13 = arith.divf %11, %12 : vector<1x32xf32>
    %cst_6 = arith.constant 9.99999974E-6 : f32
    %14 = vector.broadcast %cst_6 : f32 to vector<1x32xf32>
    %15 = arith.addf %13, %14 : vector<1x32xf32>
    %16 = math.rsqrt %15 : vector<1x32xf32>
    %17 = arith.mulf %0, %16 : vector<1x32xf32>
    %18 = arith.mulf %6, %17 : vector<1x32xf32>
    %19 = arith.subf %1, %18 : vector<1x32xf32>
    %20 = vector.broadcast %17 : vector<1x32xf32> to vector<32x32xf32>
    %21 = arith.mulf %2, %20 : vector<32x32xf32>
    %22 = vector.broadcast %19 : vector<1x32xf32> to vector<32x32xf32>
    %23 = arith.addf %21, %22 : vector<32x32xf32>
    %24 = vector.extract_strided_slice %23 {offsets = [0, 0], sizes = [26, 32], strides = [1, 1]} : vector<32x32xf32> to vector<26x32xf32>
    %25 = vector.extract_strided_slice %23 {offsets = [2, 0], sizes = [26, 32], strides = [1, 1]} : vector<32x32xf32> to vector<26x32xf32>
    %26 = vector.extract_strided_slice %23 {offsets = [4, 0], sizes = [26, 32], strides = [1, 1]} : vector<32x32xf32> to vector<26x32xf32>
    %27 = vector.extract_strided_slice %23 {offsets = [6, 0], sizes = [26, 32], strides = [1, 1]} : vector<32x32xf32> to vector<26x32xf32>
    %28 = tpu.concatenate %24, %25, %26, %27 in 1 : vector<26x32xf32>, vector<26x32xf32>, vector<26x32xf32>, vector<26x32xf32> -> vector<26x128xf32>
    %c0_7 = arith.constant 0 : index
    %c0_8 = arith.constant 0 : index
    %29 = vector.load %arg2[%c0_7, %c0_8] : memref<272x128xf32, #tpu.memory_space<vmem>>, vector<128x32xf32>
    %c258 = arith.constant 258 : index
    %c0_9 = arith.constant 0 : index
    %30 = vector.load %arg2[%c258, %c0_9] : memref<272x128xf32, #tpu.memory_space<vmem>>, vector<1x32xf32>
    %cst_10 = arith.constant dense<0.000000e+00> : vector<26x32xf32>
    %31 = tpu.matmul %28, %29, %cst_10 {dimension_numbers = #tpu.dot_dimension_numbers<[1], [0], [0], [1], [0, 0, 1, 1], [], []>} : vector<26x128xf32>, vector<128x32xf32>, vector<26x32xf32> -> vector<26x32xf32>
    %32 = vector.broadcast %30 : vector<1x32xf32> to vector<26x32xf32>
    %33 = arith.addf %31, %32 : vector<26x32xf32>
    %cst_11 = arith.constant 0.000000e+00 : f32
    %34 = vector.broadcast %cst_11 : f32 to vector<26x32xf32>
    %35 = arith.maximumf %33, %34 : vector<26x32xf32>
    %c128 = arith.constant 128 : index
    %c0_12 = arith.constant 0 : index
    %36 = vector.load %arg2[%c128, %c0_12] : memref<272x128xf32, #tpu.memory_space<vmem>>, vector<32x96xf32>
    %c259 = arith.constant 259 : index
    %c0_13 = arith.constant 0 : index
    %37 = vector.load %arg2[%c259, %c0_13] : memref<272x128xf32, #tpu.memory_space<vmem>>, vector<1x96xf32>
    %cst_14 = arith.constant dense<0.000000e+00> : vector<26x96xf32>
    %38 = tpu.matmul %35, %36, %cst_14 {dimension_numbers = #tpu.dot_dimension_numbers<[1], [0], [0], [1], [0, 0, 1, 1], [], []>} : vector<26x32xf32>, vector<32x96xf32>, vector<26x96xf32> -> vector<26x96xf32>
    %39 = vector.broadcast %37 : vector<1x96xf32> to vector<26x96xf32>
    %40 = arith.addf %38, %39 : vector<26x96xf32>
    %c0_15 = arith.constant 0 : index
    %c0_16 = arith.constant 0 : index
    %41 = vector.load %arg4[%c0_15, %c0_16] : memref<26x96xf32, #tpu.memory_space<vmem>>, vector<26x96xf32>
    tpu.vector_store %arg4[%c0_15, %c0_16], %40 {strides = array<i32>} : memref<26x96xf32, #tpu.memory_space<vmem>>, vector<26x96xf32>,
    %c160 = arith.constant 160 : index
    %c0_17 = arith.constant 0 : index
    %42 = vector.load %arg2[%c160, %c0_17] : memref<272x128xf32, #tpu.memory_space<vmem>>, vector<32x96xf32>
    %c260 = arith.constant 260 : index
    %c0_18 = arith.constant 0 : index
    %43 = vector.load %arg2[%c260, %c0_18] : memref<272x128xf32, #tpu.memory_space<vmem>>, vector<1x96xf32>
    %cst_19 = arith.constant 0.000000e+00 : f32
    %44 = vector.broadcast %cst_19 : f32 to vector<2x32xf32>
    %c0_i32 = arith.constant 0 : i32
    %c2_i32 = arith.constant 2 : i32
    %45 = arith.muli %c0_i32, %c2_i32 : i32
    %46 = tpu.assume_multiple %45, 2 : i32
    %47 = arith.index_cast %46 : i32 to index
    %c0_20 = arith.constant 0 : index
    %48 = vector.load %arg4[%47, %c0_20] : memref<26x96xf32, #tpu.memory_space<vmem>>, vector<2x96xf32>
    %cst_21 = arith.constant dense<0.000000e+00> : vector<2x96xf32>
    %49 = tpu.matmul %44, %42, %cst_21 {dimension_numbers = #tpu.dot_dimension_numbers<[1], [0], [0], [1], [0, 0, 1, 1], [], []>} : vector<2x32xf32>, vector<32x96xf32>, vector<2x96xf32> -> vector<2x96xf32>
    %50 = vector.broadcast %43 : vector<1x96xf32> to vector<2x96xf32>
    %51 = arith.addf %49, %50 : vector<2x96xf32>
    %52 = vector.extract_strided_slice %48 {offsets = [0, 0], sizes = [2, 64], strides = [1, 1]} : vector<2x96xf32> to vector<2x64xf32>
    %53 = vector.extract_strided_slice %51 {offsets = [0, 0], sizes = [2, 64], strides = [1, 1]} : vector<2x96xf32> to vector<2x64xf32>
    %54 = arith.addf %52, %53 : vector<2x64xf32>
    %55 = arith.negf %54 : vector<2x64xf32>
    %56 = math.exp %55 : vector<2x64xf32>
    %cst_22 = arith.constant 1.000000e+00 : f32
    %57 = vector.broadcast %cst_22 : f32 to vector<2x64xf32>
    %58 = arith.addf %57, %56 : vector<2x64xf32>
    %59 = arith.divf %57, %58 : vector<2x64xf32>
    %60 = vector.extract_strided_slice %59 {offsets = [0, 0], sizes = [2, 32], strides = [1, 1]} : vector<2x64xf32> to vector<2x32xf32>
    %61 = vector.extract_strided_slice %59 {offsets = [0, 32], sizes = [2, 32], strides = [1, 1]} : vector<2x64xf32> to vector<2x32xf32>
    %62 = vector.extract_strided_slice %48 {offsets = [0, 64], sizes = [2, 32], strides = [1, 1]} : vector<2x96xf32> to vector<2x32xf32>
    %63 = vector.extract_strided_slice %51 {offsets = [0, 64], sizes = [2, 32], strides = [1, 1]} : vector<2x96xf32> to vector<2x32xf32>
    %64 = arith.mulf %60, %63 : vector<2x32xf32>
    %65 = arith.addf %62, %64 : vector<2x32xf32>
    %66 = math.tanh %65 : vector<2x32xf32>
    %cst_23 = arith.constant 1.000000e+00 : f32
    %67 = vector.broadcast %cst_23 : f32 to vector<2x32xf32>
    %68 = arith.subf %67, %61 : vector<2x32xf32>
    %69 = arith.mulf %68, %66 : vector<2x32xf32>
    %70 = arith.mulf %61, %44 : vector<2x32xf32>
    %71 = arith.addf %69, %70 : vector<2x32xf32>
    %c1_i32 = arith.constant 1 : i32
    %c2_i32_24 = arith.constant 2 : i32
    %72 = arith.muli %c1_i32, %c2_i32_24 : i32
    %73 = tpu.assume_multiple %72, 2 : i32
    %74 = arith.index_cast %73 : i32 to index
    %c0_25 = arith.constant 0 : index
    %75 = vector.load %arg4[%74, %c0_25] : memref<26x96xf32, #tpu.memory_space<vmem>>, vector<2x96xf32>
    %cst_26 = arith.constant dense<0.000000e+00> : vector<2x96xf32>
    %76 = tpu.matmul %71, %42, %cst_26 {dimension_numbers = #tpu.dot_dimension_numbers<[1], [0], [0], [1], [0, 0, 1, 1], [], []>} : vector<2x32xf32>, vector<32x96xf32>, vector<2x96xf32> -> vector<2x96xf32>
    %77 = vector.broadcast %43 : vector<1x96xf32> to vector<2x96xf32>
    %78 = arith.addf %76, %77 : vector<2x96xf32>
    %79 = vector.extract_strided_slice %75 {offsets = [0, 0], sizes = [2, 64], strides = [1, 1]} : vector<2x96xf32> to vector<2x64xf32>
    %80 = vector.extract_strided_slice %78 {offsets = [0, 0], sizes = [2, 64], strides = [1, 1]} : vector<2x96xf32> to vector<2x64xf32>
    %81 = arith.addf %79, %80 : vector<2x64xf32>
    %82 = arith.negf %81 : vector<2x64xf32>
    %83 = math.exp %82 : vector<2x64xf32>
    %cst_27 = arith.constant 1.000000e+00 : f32
    %84 = vector.broadcast %cst_27 : f32 to vector<2x64xf32>
    %85 = arith.addf %84, %83 : vector<2x64xf32>
    %86 = arith.divf %84, %85 : vector<2x64xf32>
    %87 = vector.extract_strided_slice %86 {offsets = [0, 0], sizes = [2, 32], strides = [1, 1]} : vector<2x64xf32> to vector<2x32xf32>
    %88 = vector.extract_strided_slice %86 {offsets = [0, 32], sizes = [2, 32], strides = [1, 1]} : vector<2x64xf32> to vector<2x32xf32>
    %89 = vector.extract_strided_slice %75 {offsets = [0, 64], sizes = [2, 32], strides = [1, 1]} : vector<2x96xf32> to vector<2x32xf32>
    %90 = vector.extract_strided_slice %78 {offsets = [0, 64], sizes = [2, 32], strides = [1, 1]} : vector<2x96xf32> to vector<2x32xf32>
    %91 = arith.mulf %87, %90 : vector<2x32xf32>
    %92 = arith.addf %89, %91 : vector<2x32xf32>
    %93 = math.tanh %92 : vector<2x32xf32>
    %cst_28 = arith.constant 1.000000e+00 : f32
    %94 = vector.broadcast %cst_28 : f32 to vector<2x32xf32>
    %95 = arith.subf %94, %88 : vector<2x32xf32>
    %96 = arith.mulf %95, %93 : vector<2x32xf32>
    %97 = arith.mulf %88, %71 : vector<2x32xf32>
    %98 = arith.addf %96, %97 : vector<2x32xf32>
    %c2_i32_29 = arith.constant 2 : i32
    %c2_i32_30 = arith.constant 2 : i32
    %99 = arith.muli %c2_i32_29, %c2_i32_30 : i32
    %100 = tpu.assume_multiple %99, 2 : i32
    %101 = arith.index_cast %100 : i32 to index
    %c0_31 = arith.constant 0 : index
    %102 = vector.load %arg4[%101, %c0_31] : memref<26x96xf32, #tpu.memory_space<vmem>>, vector<2x96xf32>
    %cst_32 = arith.constant dense<0.000000e+00> : vector<2x96xf32>
    %103 = tpu.matmul %98, %42, %cst_32 {dimension_numbers = #tpu.dot_dimension_numbers<[1], [0], [0], [1], [0, 0, 1, 1], [], []>} : vector<2x32xf32>, vector<32x96xf32>, vector<2x96xf32> -> vector<2x96xf32>
    %104 = vector.broadcast %43 : vector<1x96xf32> to vector<2x96xf32>
    %105 = arith.addf %103, %104 : vector<2x96xf32>
    %106 = vector.extract_strided_slice %102 {offsets = [0, 0], sizes = [2, 64], strides = [1, 1]} : vector<2x96xf32> to vector<2x64xf32>
    %107 = vector.extract_strided_slice %105 {offsets = [0, 0], sizes = [2, 64], strides = [1, 1]} : vector<2x96xf32> to vector<2x64xf32>
    %108 = arith.addf %106, %107 : vector<2x64xf32>
    %109 = arith.negf %108 : vector<2x64xf32>
    %110 = math.exp %109 : vector<2x64xf32>
    %cst_33 = arith.constant 1.000000e+00 : f32
    %111 = vector.broadcast %cst_33 : f32 to vector<2x64xf32>
    %112 = arith.addf %111, %110 : vector<2x64xf32>
    %113 = arith.divf %111, %112 : vector<2x64xf32>
    %114 = vector.extract_strided_slice %113 {offsets = [0, 0], sizes = [2, 32], strides = [1, 1]} : vector<2x64xf32> to vector<2x32xf32>
    %115 = vector.extract_strided_slice %113 {offsets = [0, 32], sizes = [2, 32], strides = [1, 1]} : vector<2x64xf32> to vector<2x32xf32>
    %116 = vector.extract_strided_slice %102 {offsets = [0, 64], sizes = [2, 32], strides = [1, 1]} : vector<2x96xf32> to vector<2x32xf32>
    %117 = vector.extract_strided_slice %105 {offsets = [0, 64], sizes = [2, 32], strides = [1, 1]} : vector<2x96xf32> to vector<2x32xf32>
    %118 = arith.mulf %114, %117 : vector<2x32xf32>
    %119 = arith.addf %116, %118 : vector<2x32xf32>
    %120 = math.tanh %119 : vector<2x32xf32>
    %cst_34 = arith.constant 1.000000e+00 : f32
    %121 = vector.broadcast %cst_34 : f32 to vector<2x32xf32>
    %122 = arith.subf %121, %115 : vector<2x32xf32>
    %123 = arith.mulf %122, %120 : vector<2x32xf32>
    %124 = arith.mulf %115, %98 : vector<2x32xf32>
    %125 = arith.addf %123, %124 : vector<2x32xf32>
    %c3_i32 = arith.constant 3 : i32
    %c2_i32_35 = arith.constant 2 : i32
    %126 = arith.muli %c3_i32, %c2_i32_35 : i32
    %127 = tpu.assume_multiple %126, 2 : i32
    %128 = arith.index_cast %127 : i32 to index
    %c0_36 = arith.constant 0 : index
    %129 = vector.load %arg4[%128, %c0_36] : memref<26x96xf32, #tpu.memory_space<vmem>>, vector<2x96xf32>
    %cst_37 = arith.constant dense<0.000000e+00> : vector<2x96xf32>
    %130 = tpu.matmul %125, %42, %cst_37 {dimension_numbers = #tpu.dot_dimension_numbers<[1], [0], [0], [1], [0, 0, 1, 1], [], []>} : vector<2x32xf32>, vector<32x96xf32>, vector<2x96xf32> -> vector<2x96xf32>
    %131 = vector.broadcast %43 : vector<1x96xf32> to vector<2x96xf32>
    %132 = arith.addf %130, %131 : vector<2x96xf32>
    %133 = vector.extract_strided_slice %129 {offsets = [0, 0], sizes = [2, 64], strides = [1, 1]} : vector<2x96xf32> to vector<2x64xf32>
    %134 = vector.extract_strided_slice %132 {offsets = [0, 0], sizes = [2, 64], strides = [1, 1]} : vector<2x96xf32> to vector<2x64xf32>
    %135 = arith.addf %133, %134 : vector<2x64xf32>
    %136 = arith.negf %135 : vector<2x64xf32>
    %137 = math.exp %136 : vector<2x64xf32>
    %cst_38 = arith.constant 1.000000e+00 : f32
    %138 = vector.broadcast %cst_38 : f32 to vector<2x64xf32>
    %139 = arith.addf %138, %137 : vector<2x64xf32>
    %140 = arith.divf %138, %139 : vector<2x64xf32>
    %141 = vector.extract_strided_slice %140 {offsets = [0, 0], sizes = [2, 32], strides = [1, 1]} : vector<2x64xf32> to vector<2x32xf32>
    %142 = vector.extract_strided_slice %140 {offsets = [0, 32], sizes = [2, 32], strides = [1, 1]} : vector<2x64xf32> to vector<2x32xf32>
    %143 = vector.extract_strided_slice %129 {offsets = [0, 64], sizes = [2, 32], strides = [1, 1]} : vector<2x96xf32> to vector<2x32xf32>
    %144 = vector.extract_strided_slice %132 {offsets = [0, 64], sizes = [2, 32], strides = [1, 1]} : vector<2x96xf32> to vector<2x32xf32>
    %145 = arith.mulf %141, %144 : vector<2x32xf32>
    %146 = arith.addf %143, %145 : vector<2x32xf32>
    %147 = math.tanh %146 : vector<2x32xf32>
    %cst_39 = arith.constant 1.000000e+00 : f32
    %148 = vector.broadcast %cst_39 : f32 to vector<2x32xf32>
    %149 = arith.subf %148, %142 : vector<2x32xf32>
    %150 = arith.mulf %149, %147 : vector<2x32xf32>
    %151 = arith.mulf %142, %125 : vector<2x32xf32>
    %152 = arith.addf %150, %151 : vector<2x32xf32>
    %c4_i32 = arith.constant 4 : i32
    %c2_i32_40 = arith.constant 2 : i32
    %153 = arith.muli %c4_i32, %c2_i32_40 : i32
    %154 = tpu.assume_multiple %153, 2 : i32
    %155 = arith.index_cast %154 : i32 to index
    %c0_41 = arith.constant 0 : index
    %156 = vector.load %arg4[%155, %c0_41] : memref<26x96xf32, #tpu.memory_space<vmem>>, vector<2x96xf32>
    %cst_42 = arith.constant dense<0.000000e+00> : vector<2x96xf32>
    %157 = tpu.matmul %152, %42, %cst_42 {dimension_numbers = #tpu.dot_dimension_numbers<[1], [0], [0], [1], [0, 0, 1, 1], [], []>} : vector<2x32xf32>, vector<32x96xf32>, vector<2x96xf32> -> vector<2x96xf32>
    %158 = vector.broadcast %43 : vector<1x96xf32> to vector<2x96xf32>
    %159 = arith.addf %157, %158 : vector<2x96xf32>
    %160 = vector.extract_strided_slice %156 {offsets = [0, 0], sizes = [2, 64], strides = [1, 1]} : vector<2x96xf32> to vector<2x64xf32>
    %161 = vector.extract_strided_slice %159 {offsets = [0, 0], sizes = [2, 64], strides = [1, 1]} : vector<2x96xf32> to vector<2x64xf32>
    %162 = arith.addf %160, %161 : vector<2x64xf32>
    %163 = arith.negf %162 : vector<2x64xf32>
    %164 = math.exp %163 : vector<2x64xf32>
    %cst_43 = arith.constant 1.000000e+00 : f32
    %165 = vector.broadcast %cst_43 : f32 to vector<2x64xf32>
    %166 = arith.addf %165, %164 : vector<2x64xf32>
    %167 = arith.divf %165, %166 : vector<2x64xf32>
    %168 = vector.extract_strided_slice %167 {offsets = [0, 0], sizes = [2, 32], strides = [1, 1]} : vector<2x64xf32> to vector<2x32xf32>
    %169 = vector.extract_strided_slice %167 {offsets = [0, 32], sizes = [2, 32], strides = [1, 1]} : vector<2x64xf32> to vector<2x32xf32>
    %170 = vector.extract_strided_slice %156 {offsets = [0, 64], sizes = [2, 32], strides = [1, 1]} : vector<2x96xf32> to vector<2x32xf32>
    %171 = vector.extract_strided_slice %159 {offsets = [0, 64], sizes = [2, 32], strides = [1, 1]} : vector<2x96xf32> to vector<2x32xf32>
    %172 = arith.mulf %168, %171 : vector<2x32xf32>
    %173 = arith.addf %170, %172 : vector<2x32xf32>
    %174 = math.tanh %173 : vector<2x32xf32>
    %cst_44 = arith.constant 1.000000e+00 : f32
    %175 = vector.broadcast %cst_44 : f32 to vector<2x32xf32>
    %176 = arith.subf %175, %169 : vector<2x32xf32>
    %177 = arith.mulf %176, %174 : vector<2x32xf32>
    %178 = arith.mulf %169, %152 : vector<2x32xf32>
    %179 = arith.addf %177, %178 : vector<2x32xf32>
    %c5_i32 = arith.constant 5 : i32
    %c2_i32_45 = arith.constant 2 : i32
    %180 = arith.muli %c5_i32, %c2_i32_45 : i32
    %181 = tpu.assume_multiple %180, 2 : i32
    %182 = arith.index_cast %181 : i32 to index
    %c0_46 = arith.constant 0 : index
    %183 = vector.load %arg4[%182, %c0_46] : memref<26x96xf32, #tpu.memory_space<vmem>>, vector<2x96xf32>
    %cst_47 = arith.constant dense<0.000000e+00> : vector<2x96xf32>
    %184 = tpu.matmul %179, %42, %cst_47 {dimension_numbers = #tpu.dot_dimension_numbers<[1], [0], [0], [1], [0, 0, 1, 1], [], []>} : vector<2x32xf32>, vector<32x96xf32>, vector<2x96xf32> -> vector<2x96xf32>
    %185 = vector.broadcast %43 : vector<1x96xf32> to vector<2x96xf32>
    %186 = arith.addf %184, %185 : vector<2x96xf32>
    %187 = vector.extract_strided_slice %183 {offsets = [0, 0], sizes = [2, 64], strides = [1, 1]} : vector<2x96xf32> to vector<2x64xf32>
    %188 = vector.extract_strided_slice %186 {offsets = [0, 0], sizes = [2, 64], strides = [1, 1]} : vector<2x96xf32> to vector<2x64xf32>
    %189 = arith.addf %187, %188 : vector<2x64xf32>
    %190 = arith.negf %189 : vector<2x64xf32>
    %191 = math.exp %190 : vector<2x64xf32>
    %cst_48 = arith.constant 1.000000e+00 : f32
    %192 = vector.broadcast %cst_48 : f32 to vector<2x64xf32>
    %193 = arith.addf %192, %191 : vector<2x64xf32>
    %194 = arith.divf %192, %193 : vector<2x64xf32>
    %195 = vector.extract_strided_slice %194 {offsets = [0, 0], sizes = [2, 32], strides = [1, 1]} : vector<2x64xf32> to vector<2x32xf32>
    %196 = vector.extract_strided_slice %194 {offsets = [0, 32], sizes = [2, 32], strides = [1, 1]} : vector<2x64xf32> to vector<2x32xf32>
    %197 = vector.extract_strided_slice %183 {offsets = [0, 64], sizes = [2, 32], strides = [1, 1]} : vector<2x96xf32> to vector<2x32xf32>
    %198 = vector.extract_strided_slice %186 {offsets = [0, 64], sizes = [2, 32], strides = [1, 1]} : vector<2x96xf32> to vector<2x32xf32>
    %199 = arith.mulf %195, %198 : vector<2x32xf32>
    %200 = arith.addf %197, %199 : vector<2x32xf32>
    %201 = math.tanh %200 : vector<2x32xf32>
    %cst_49 = arith.constant 1.000000e+00 : f32
    %202 = vector.broadcast %cst_49 : f32 to vector<2x32xf32>
    %203 = arith.subf %202, %196 : vector<2x32xf32>
    %204 = arith.mulf %203, %201 : vector<2x32xf32>
    %205 = arith.mulf %196, %179 : vector<2x32xf32>
    %206 = arith.addf %204, %205 : vector<2x32xf32>
    %c6_i32 = arith.constant 6 : i32
    %c2_i32_50 = arith.constant 2 : i32
    %207 = arith.muli %c6_i32, %c2_i32_50 : i32
    %208 = tpu.assume_multiple %207, 2 : i32
    %209 = arith.index_cast %208 : i32 to index
    %c0_51 = arith.constant 0 : index
    %210 = vector.load %arg4[%209, %c0_51] : memref<26x96xf32, #tpu.memory_space<vmem>>, vector<2x96xf32>
    %cst_52 = arith.constant dense<0.000000e+00> : vector<2x96xf32>
    %211 = tpu.matmul %206, %42, %cst_52 {dimension_numbers = #tpu.dot_dimension_numbers<[1], [0], [0], [1], [0, 0, 1, 1], [], []>} : vector<2x32xf32>, vector<32x96xf32>, vector<2x96xf32> -> vector<2x96xf32>
    %212 = vector.broadcast %43 : vector<1x96xf32> to vector<2x96xf32>
    %213 = arith.addf %211, %212 : vector<2x96xf32>
    %214 = vector.extract_strided_slice %210 {offsets = [0, 0], sizes = [2, 64], strides = [1, 1]} : vector<2x96xf32> to vector<2x64xf32>
    %215 = vector.extract_strided_slice %213 {offsets = [0, 0], sizes = [2, 64], strides = [1, 1]} : vector<2x96xf32> to vector<2x64xf32>
    %216 = arith.addf %214, %215 : vector<2x64xf32>
    %217 = arith.negf %216 : vector<2x64xf32>
    %218 = math.exp %217 : vector<2x64xf32>
    %cst_53 = arith.constant 1.000000e+00 : f32
    %219 = vector.broadcast %cst_53 : f32 to vector<2x64xf32>
    %220 = arith.addf %219, %218 : vector<2x64xf32>
    %221 = arith.divf %219, %220 : vector<2x64xf32>
    %222 = vector.extract_strided_slice %221 {offsets = [0, 0], sizes = [2, 32], strides = [1, 1]} : vector<2x64xf32> to vector<2x32xf32>
    %223 = vector.extract_strided_slice %221 {offsets = [0, 32], sizes = [2, 32], strides = [1, 1]} : vector<2x64xf32> to vector<2x32xf32>
    %224 = vector.extract_strided_slice %210 {offsets = [0, 64], sizes = [2, 32], strides = [1, 1]} : vector<2x96xf32> to vector<2x32xf32>
    %225 = vector.extract_strided_slice %213 {offsets = [0, 64], sizes = [2, 32], strides = [1, 1]} : vector<2x96xf32> to vector<2x32xf32>
    %226 = arith.mulf %222, %225 : vector<2x32xf32>
    %227 = arith.addf %224, %226 : vector<2x32xf32>
    %228 = math.tanh %227 : vector<2x32xf32>
    %cst_54 = arith.constant 1.000000e+00 : f32
    %229 = vector.broadcast %cst_54 : f32 to vector<2x32xf32>
    %230 = arith.subf %229, %223 : vector<2x32xf32>
    %231 = arith.mulf %230, %228 : vector<2x32xf32>
    %232 = arith.mulf %223, %206 : vector<2x32xf32>
    %233 = arith.addf %231, %232 : vector<2x32xf32>
    %c7_i32 = arith.constant 7 : i32
    %c2_i32_55 = arith.constant 2 : i32
    %234 = arith.muli %c7_i32, %c2_i32_55 : i32
    %235 = tpu.assume_multiple %234, 2 : i32
    %236 = arith.index_cast %235 : i32 to index
    %c0_56 = arith.constant 0 : index
    %237 = vector.load %arg4[%236, %c0_56] : memref<26x96xf32, #tpu.memory_space<vmem>>, vector<2x96xf32>
    %cst_57 = arith.constant dense<0.000000e+00> : vector<2x96xf32>
    %238 = tpu.matmul %233, %42, %cst_57 {dimension_numbers = #tpu.dot_dimension_numbers<[1], [0], [0], [1], [0, 0, 1, 1], [], []>} : vector<2x32xf32>, vector<32x96xf32>, vector<2x96xf32> -> vector<2x96xf32>
    %239 = vector.broadcast %43 : vector<1x96xf32> to vector<2x96xf32>
    %240 = arith.addf %238, %239 : vector<2x96xf32>
    %241 = vector.extract_strided_slice %237 {offsets = [0, 0], sizes = [2, 64], strides = [1, 1]} : vector<2x96xf32> to vector<2x64xf32>
    %242 = vector.extract_strided_slice %240 {offsets = [0, 0], sizes = [2, 64], strides = [1, 1]} : vector<2x96xf32> to vector<2x64xf32>
    %243 = arith.addf %241, %242 : vector<2x64xf32>
    %244 = arith.negf %243 : vector<2x64xf32>
    %245 = math.exp %244 : vector<2x64xf32>
    %cst_58 = arith.constant 1.000000e+00 : f32
    %246 = vector.broadcast %cst_58 : f32 to vector<2x64xf32>
    %247 = arith.addf %246, %245 : vector<2x64xf32>
    %248 = arith.divf %246, %247 : vector<2x64xf32>
    %249 = vector.extract_strided_slice %248 {offsets = [0, 0], sizes = [2, 32], strides = [1, 1]} : vector<2x64xf32> to vector<2x32xf32>
    %250 = vector.extract_strided_slice %248 {offsets = [0, 32], sizes = [2, 32], strides = [1, 1]} : vector<2x64xf32> to vector<2x32xf32>
    %251 = vector.extract_strided_slice %237 {offsets = [0, 64], sizes = [2, 32], strides = [1, 1]} : vector<2x96xf32> to vector<2x32xf32>
    %252 = vector.extract_strided_slice %240 {offsets = [0, 64], sizes = [2, 32], strides = [1, 1]} : vector<2x96xf32> to vector<2x32xf32>
    %253 = arith.mulf %249, %252 : vector<2x32xf32>
    %254 = arith.addf %251, %253 : vector<2x32xf32>
    %255 = math.tanh %254 : vector<2x32xf32>
    %cst_59 = arith.constant 1.000000e+00 : f32
    %256 = vector.broadcast %cst_59 : f32 to vector<2x32xf32>
    %257 = arith.subf %256, %250 : vector<2x32xf32>
    %258 = arith.mulf %257, %255 : vector<2x32xf32>
    %259 = arith.mulf %250, %233 : vector<2x32xf32>
    %260 = arith.addf %258, %259 : vector<2x32xf32>
    %c8_i32 = arith.constant 8 : i32
    %c2_i32_60 = arith.constant 2 : i32
    %261 = arith.muli %c8_i32, %c2_i32_60 : i32
    %262 = tpu.assume_multiple %261, 2 : i32
    %263 = arith.index_cast %262 : i32 to index
    %c0_61 = arith.constant 0 : index
    %264 = vector.load %arg4[%263, %c0_61] : memref<26x96xf32, #tpu.memory_space<vmem>>, vector<2x96xf32>
    %cst_62 = arith.constant dense<0.000000e+00> : vector<2x96xf32>
    %265 = tpu.matmul %260, %42, %cst_62 {dimension_numbers = #tpu.dot_dimension_numbers<[1], [0], [0], [1], [0, 0, 1, 1], [], []>} : vector<2x32xf32>, vector<32x96xf32>, vector<2x96xf32> -> vector<2x96xf32>
    %266 = vector.broadcast %43 : vector<1x96xf32> to vector<2x96xf32>
    %267 = arith.addf %265, %266 : vector<2x96xf32>
    %268 = vector.extract_strided_slice %264 {offsets = [0, 0], sizes = [2, 64], strides = [1, 1]} : vector<2x96xf32> to vector<2x64xf32>
    %269 = vector.extract_strided_slice %267 {offsets = [0, 0], sizes = [2, 64], strides = [1, 1]} : vector<2x96xf32> to vector<2x64xf32>
    %270 = arith.addf %268, %269 : vector<2x64xf32>
    %271 = arith.negf %270 : vector<2x64xf32>
    %272 = math.exp %271 : vector<2x64xf32>
    %cst_63 = arith.constant 1.000000e+00 : f32
    %273 = vector.broadcast %cst_63 : f32 to vector<2x64xf32>
    %274 = arith.addf %273, %272 : vector<2x64xf32>
    %275 = arith.divf %273, %274 : vector<2x64xf32>
    %276 = vector.extract_strided_slice %275 {offsets = [0, 0], sizes = [2, 32], strides = [1, 1]} : vector<2x64xf32> to vector<2x32xf32>
    %277 = vector.extract_strided_slice %275 {offsets = [0, 32], sizes = [2, 32], strides = [1, 1]} : vector<2x64xf32> to vector<2x32xf32>
    %278 = vector.extract_strided_slice %264 {offsets = [0, 64], sizes = [2, 32], strides = [1, 1]} : vector<2x96xf32> to vector<2x32xf32>
    %279 = vector.extract_strided_slice %267 {offsets = [0, 64], sizes = [2, 32], strides = [1, 1]} : vector<2x96xf32> to vector<2x32xf32>
    %280 = arith.mulf %276, %279 : vector<2x32xf32>
    %281 = arith.addf %278, %280 : vector<2x32xf32>
    %282 = math.tanh %281 : vector<2x32xf32>
    %cst_64 = arith.constant 1.000000e+00 : f32
    %283 = vector.broadcast %cst_64 : f32 to vector<2x32xf32>
    %284 = arith.subf %283, %277 : vector<2x32xf32>
    %285 = arith.mulf %284, %282 : vector<2x32xf32>
    %286 = arith.mulf %277, %260 : vector<2x32xf32>
    %287 = arith.addf %285, %286 : vector<2x32xf32>
    %c9_i32 = arith.constant 9 : i32
    %c2_i32_65 = arith.constant 2 : i32
    %288 = arith.muli %c9_i32, %c2_i32_65 : i32
    %289 = tpu.assume_multiple %288, 2 : i32
    %290 = arith.index_cast %289 : i32 to index
    %c0_66 = arith.constant 0 : index
    %291 = vector.load %arg4[%290, %c0_66] : memref<26x96xf32, #tpu.memory_space<vmem>>, vector<2x96xf32>
    %cst_67 = arith.constant dense<0.000000e+00> : vector<2x96xf32>
    %292 = tpu.matmul %287, %42, %cst_67 {dimension_numbers = #tpu.dot_dimension_numbers<[1], [0], [0], [1], [0, 0, 1, 1], [], []>} : vector<2x32xf32>, vector<32x96xf32>, vector<2x96xf32> -> vector<2x96xf32>
    %293 = vector.broadcast %43 : vector<1x96xf32> to vector<2x96xf32>
    %294 = arith.addf %292, %293 : vector<2x96xf32>
    %295 = vector.extract_strided_slice %291 {offsets = [0, 0], sizes = [2, 64], strides = [1, 1]} : vector<2x96xf32> to vector<2x64xf32>
    %296 = vector.extract_strided_slice %294 {offsets = [0, 0], sizes = [2, 64], strides = [1, 1]} : vector<2x96xf32> to vector<2x64xf32>
    %297 = arith.addf %295, %296 : vector<2x64xf32>
    %298 = arith.negf %297 : vector<2x64xf32>
    %299 = math.exp %298 : vector<2x64xf32>
    %cst_68 = arith.constant 1.000000e+00 : f32
    %300 = vector.broadcast %cst_68 : f32 to vector<2x64xf32>
    %301 = arith.addf %300, %299 : vector<2x64xf32>
    %302 = arith.divf %300, %301 : vector<2x64xf32>
    %303 = vector.extract_strided_slice %302 {offsets = [0, 0], sizes = [2, 32], strides = [1, 1]} : vector<2x64xf32> to vector<2x32xf32>
    %304 = vector.extract_strided_slice %302 {offsets = [0, 32], sizes = [2, 32], strides = [1, 1]} : vector<2x64xf32> to vector<2x32xf32>
    %305 = vector.extract_strided_slice %291 {offsets = [0, 64], sizes = [2, 32], strides = [1, 1]} : vector<2x96xf32> to vector<2x32xf32>
    %306 = vector.extract_strided_slice %294 {offsets = [0, 64], sizes = [2, 32], strides = [1, 1]} : vector<2x96xf32> to vector<2x32xf32>
    %307 = arith.mulf %303, %306 : vector<2x32xf32>
    %308 = arith.addf %305, %307 : vector<2x32xf32>
    %309 = math.tanh %308 : vector<2x32xf32>
    %cst_69 = arith.constant 1.000000e+00 : f32
    %310 = vector.broadcast %cst_69 : f32 to vector<2x32xf32>
    %311 = arith.subf %310, %304 : vector<2x32xf32>
    %312 = arith.mulf %311, %309 : vector<2x32xf32>
    %313 = arith.mulf %304, %287 : vector<2x32xf32>
    %314 = arith.addf %312, %313 : vector<2x32xf32>
    %c10_i32 = arith.constant 10 : i32
    %c2_i32_70 = arith.constant 2 : i32
    %315 = arith.muli %c10_i32, %c2_i32_70 : i32
    %316 = tpu.assume_multiple %315, 2 : i32
    %317 = arith.index_cast %316 : i32 to index
    %c0_71 = arith.constant 0 : index
    %318 = vector.load %arg4[%317, %c0_71] : memref<26x96xf32, #tpu.memory_space<vmem>>, vector<2x96xf32>
    %cst_72 = arith.constant dense<0.000000e+00> : vector<2x96xf32>
    %319 = tpu.matmul %314, %42, %cst_72 {dimension_numbers = #tpu.dot_dimension_numbers<[1], [0], [0], [1], [0, 0, 1, 1], [], []>} : vector<2x32xf32>, vector<32x96xf32>, vector<2x96xf32> -> vector<2x96xf32>
    %320 = vector.broadcast %43 : vector<1x96xf32> to vector<2x96xf32>
    %321 = arith.addf %319, %320 : vector<2x96xf32>
    %322 = vector.extract_strided_slice %318 {offsets = [0, 0], sizes = [2, 64], strides = [1, 1]} : vector<2x96xf32> to vector<2x64xf32>
    %323 = vector.extract_strided_slice %321 {offsets = [0, 0], sizes = [2, 64], strides = [1, 1]} : vector<2x96xf32> to vector<2x64xf32>
    %324 = arith.addf %322, %323 : vector<2x64xf32>
    %325 = arith.negf %324 : vector<2x64xf32>
    %326 = math.exp %325 : vector<2x64xf32>
    %cst_73 = arith.constant 1.000000e+00 : f32
    %327 = vector.broadcast %cst_73 : f32 to vector<2x64xf32>
    %328 = arith.addf %327, %326 : vector<2x64xf32>
    %329 = arith.divf %327, %328 : vector<2x64xf32>
    %330 = vector.extract_strided_slice %329 {offsets = [0, 0], sizes = [2, 32], strides = [1, 1]} : vector<2x64xf32> to vector<2x32xf32>
    %331 = vector.extract_strided_slice %329 {offsets = [0, 32], sizes = [2, 32], strides = [1, 1]} : vector<2x64xf32> to vector<2x32xf32>
    %332 = vector.extract_strided_slice %318 {offsets = [0, 64], sizes = [2, 32], strides = [1, 1]} : vector<2x96xf32> to vector<2x32xf32>
    %333 = vector.extract_strided_slice %321 {offsets = [0, 64], sizes = [2, 32], strides = [1, 1]} : vector<2x96xf32> to vector<2x32xf32>
    %334 = arith.mulf %330, %333 : vector<2x32xf32>
    %335 = arith.addf %332, %334 : vector<2x32xf32>
    %336 = math.tanh %335 : vector<2x32xf32>
    %cst_74 = arith.constant 1.000000e+00 : f32
    %337 = vector.broadcast %cst_74 : f32 to vector<2x32xf32>
    %338 = arith.subf %337, %331 : vector<2x32xf32>
    %339 = arith.mulf %338, %336 : vector<2x32xf32>
    %340 = arith.mulf %331, %314 : vector<2x32xf32>
    %341 = arith.addf %339, %340 : vector<2x32xf32>
    %c11_i32 = arith.constant 11 : i32
    %c2_i32_75 = arith.constant 2 : i32
    %342 = arith.muli %c11_i32, %c2_i32_75 : i32
    %343 = tpu.assume_multiple %342, 2 : i32
    %344 = arith.index_cast %343 : i32 to index
    %c0_76 = arith.constant 0 : index
    %345 = vector.load %arg4[%344, %c0_76] : memref<26x96xf32, #tpu.memory_space<vmem>>, vector<2x96xf32>
    %cst_77 = arith.constant dense<0.000000e+00> : vector<2x96xf32>
    %346 = tpu.matmul %341, %42, %cst_77 {dimension_numbers = #tpu.dot_dimension_numbers<[1], [0], [0], [1], [0, 0, 1, 1], [], []>} : vector<2x32xf32>, vector<32x96xf32>, vector<2x96xf32> -> vector<2x96xf32>
    %347 = vector.broadcast %43 : vector<1x96xf32> to vector<2x96xf32>
    %348 = arith.addf %346, %347 : vector<2x96xf32>
    %349 = vector.extract_strided_slice %345 {offsets = [0, 0], sizes = [2, 64], strides = [1, 1]} : vector<2x96xf32> to vector<2x64xf32>
    %350 = vector.extract_strided_slice %348 {offsets = [0, 0], sizes = [2, 64], strides = [1, 1]} : vector<2x96xf32> to vector<2x64xf32>
    %351 = arith.addf %349, %350 : vector<2x64xf32>
    %352 = arith.negf %351 : vector<2x64xf32>
    %353 = math.exp %352 : vector<2x64xf32>
    %cst_78 = arith.constant 1.000000e+00 : f32
    %354 = vector.broadcast %cst_78 : f32 to vector<2x64xf32>
    %355 = arith.addf %354, %353 : vector<2x64xf32>
    %356 = arith.divf %354, %355 : vector<2x64xf32>
    %357 = vector.extract_strided_slice %356 {offsets = [0, 0], sizes = [2, 32], strides = [1, 1]} : vector<2x64xf32> to vector<2x32xf32>
    %358 = vector.extract_strided_slice %356 {offsets = [0, 32], sizes = [2, 32], strides = [1, 1]} : vector<2x64xf32> to vector<2x32xf32>
    %359 = vector.extract_strided_slice %345 {offsets = [0, 64], sizes = [2, 32], strides = [1, 1]} : vector<2x96xf32> to vector<2x32xf32>
    %360 = vector.extract_strided_slice %348 {offsets = [0, 64], sizes = [2, 32], strides = [1, 1]} : vector<2x96xf32> to vector<2x32xf32>
    %361 = arith.mulf %357, %360 : vector<2x32xf32>
    %362 = arith.addf %359, %361 : vector<2x32xf32>
    %363 = math.tanh %362 : vector<2x32xf32>
    %cst_79 = arith.constant 1.000000e+00 : f32
    %364 = vector.broadcast %cst_79 : f32 to vector<2x32xf32>
    %365 = arith.subf %364, %358 : vector<2x32xf32>
    %366 = arith.mulf %365, %363 : vector<2x32xf32>
    %367 = arith.mulf %358, %341 : vector<2x32xf32>
    %368 = arith.addf %366, %367 : vector<2x32xf32>
    %c12_i32 = arith.constant 12 : i32
    %c2_i32_80 = arith.constant 2 : i32
    %369 = arith.muli %c12_i32, %c2_i32_80 : i32
    %370 = tpu.assume_multiple %369, 2 : i32
    %371 = arith.index_cast %370 : i32 to index
    %c0_81 = arith.constant 0 : index
    %372 = vector.load %arg4[%371, %c0_81] : memref<26x96xf32, #tpu.memory_space<vmem>>, vector<2x96xf32>
    %cst_82 = arith.constant dense<0.000000e+00> : vector<2x96xf32>
    %373 = tpu.matmul %368, %42, %cst_82 {dimension_numbers = #tpu.dot_dimension_numbers<[1], [0], [0], [1], [0, 0, 1, 1], [], []>} : vector<2x32xf32>, vector<32x96xf32>, vector<2x96xf32> -> vector<2x96xf32>
    %374 = vector.broadcast %43 : vector<1x96xf32> to vector<2x96xf32>
    %375 = arith.addf %373, %374 : vector<2x96xf32>
    %376 = vector.extract_strided_slice %372 {offsets = [0, 0], sizes = [2, 64], strides = [1, 1]} : vector<2x96xf32> to vector<2x64xf32>
    %377 = vector.extract_strided_slice %375 {offsets = [0, 0], sizes = [2, 64], strides = [1, 1]} : vector<2x96xf32> to vector<2x64xf32>
    %378 = arith.addf %376, %377 : vector<2x64xf32>
    %379 = arith.negf %378 : vector<2x64xf32>
    %380 = math.exp %379 : vector<2x64xf32>
    %cst_83 = arith.constant 1.000000e+00 : f32
    %381 = vector.broadcast %cst_83 : f32 to vector<2x64xf32>
    %382 = arith.addf %381, %380 : vector<2x64xf32>
    %383 = arith.divf %381, %382 : vector<2x64xf32>
    %384 = vector.extract_strided_slice %383 {offsets = [0, 0], sizes = [2, 32], strides = [1, 1]} : vector<2x64xf32> to vector<2x32xf32>
    %385 = vector.extract_strided_slice %383 {offsets = [0, 32], sizes = [2, 32], strides = [1, 1]} : vector<2x64xf32> to vector<2x32xf32>
    %386 = vector.extract_strided_slice %372 {offsets = [0, 64], sizes = [2, 32], strides = [1, 1]} : vector<2x96xf32> to vector<2x32xf32>
    %387 = vector.extract_strided_slice %375 {offsets = [0, 64], sizes = [2, 32], strides = [1, 1]} : vector<2x96xf32> to vector<2x32xf32>
    %388 = arith.mulf %384, %387 : vector<2x32xf32>
    %389 = arith.addf %386, %388 : vector<2x32xf32>
    %390 = math.tanh %389 : vector<2x32xf32>
    %cst_84 = arith.constant 1.000000e+00 : f32
    %391 = vector.broadcast %cst_84 : f32 to vector<2x32xf32>
    %392 = arith.subf %391, %385 : vector<2x32xf32>
    %393 = arith.mulf %392, %390 : vector<2x32xf32>
    %394 = arith.mulf %385, %368 : vector<2x32xf32>
    %395 = arith.addf %393, %394 : vector<2x32xf32>
    %c13_i32 = arith.constant 13 : i32
    %c192 = arith.constant 192 : index
    %c0_85 = arith.constant 0 : index
    %396 = vector.load %arg2[%c192, %c0_85] : memref<272x128xf32, #tpu.memory_space<vmem>>, vector<32x32xf32>
    %c261 = arith.constant 261 : index
    %c0_86 = arith.constant 0 : index
    %397 = vector.load %arg2[%c261, %c0_86] : memref<272x128xf32, #tpu.memory_space<vmem>>, vector<1x32xf32>
    %c262 = arith.constant 262 : index
    %c0_87 = arith.constant 0 : index
    %398 = vector.load %arg2[%c262, %c0_87] : memref<272x128xf32, #tpu.memory_space<vmem>>, vector<1x32xf32>
    %c263 = arith.constant 263 : index
    %c0_88 = arith.constant 0 : index
    %399 = vector.load %arg2[%c263, %c0_88] : memref<272x128xf32, #tpu.memory_space<vmem>>, vector<1x32xf32>
    %c224 = arith.constant 224 : index
    %c0_89 = arith.constant 0 : index
    %400 = vector.load %arg2[%c224, %c0_89] : memref<272x128xf32, #tpu.memory_space<vmem>>, vector<32x3xf32>
    %c264 = arith.constant 264 : index
    %c0_90 = arith.constant 0 : index
    %401 = vector.load %arg2[%c264, %c0_90] : memref<272x128xf32, #tpu.memory_space<vmem>>, vector<1x3xf32>
    %cst_91 = arith.constant dense<0.000000e+00> : vector<2x32xf32>
    %402 = tpu.matmul %395, %396, %cst_91 {dimension_numbers = #tpu.dot_dimension_numbers<[1], [0], [0], [1], [0, 0, 1, 1], [], []>} : vector<2x32xf32>, vector<32x32xf32>, vector<2x32xf32> -> vector<2x32xf32>
    %403 = vector.broadcast %397 : vector<1x32xf32> to vector<2x32xf32>
    %404 = arith.addf %402, %403 : vector<2x32xf32>
    %cst_92 = arith.constant dense<0.000000e+00> : vector<2xf32>
    %405 = vector.multi_reduction <add>, %404, %cst_92 [1] : vector<2x32xf32> to vector<2xf32>
    %406 = vector.shape_cast %405 : vector<2xf32> to vector<2x1xf32>
    %cst_93 = arith.constant 3.200000e+01 : f32
    %407 = vector.broadcast %cst_93 : f32 to vector<2x1xf32>
    %408 = arith.divf %406, %407 : vector<2x1xf32>
    %409 = vector.broadcast %408 : vector<2x1xf32> to vector<2x32xf32>
    %410 = arith.subf %404, %409 : vector<2x32xf32>
    %411 = arith.mulf %410, %410 : vector<2x32xf32>
    %cst_94 = arith.constant dense<0.000000e+00> : vector<2xf32>
    %412 = vector.multi_reduction <add>, %411, %cst_94 [1] : vector<2x32xf32> to vector<2xf32>
    %413 = vector.shape_cast %412 : vector<2xf32> to vector<2x1xf32>
    %cst_95 = arith.constant 3.200000e+01 : f32
    %414 = vector.broadcast %cst_95 : f32 to vector<2x1xf32>
    %415 = arith.divf %413, %414 : vector<2x1xf32>
    %416 = vector.broadcast %408 : vector<2x1xf32> to vector<2x32xf32>
    %417 = arith.subf %404, %416 : vector<2x32xf32>
    %cst_96 = arith.constant 9.99999974E-6 : f32
    %418 = vector.broadcast %cst_96 : f32 to vector<2x1xf32>
    %419 = arith.addf %415, %418 : vector<2x1xf32>
    %420 = math.rsqrt %419 : vector<2x1xf32>
    %421 = vector.broadcast %420 : vector<2x1xf32> to vector<2x32xf32>
    %422 = arith.mulf %417, %421 : vector<2x32xf32>
    %423 = vector.broadcast %398 : vector<1x32xf32> to vector<2x32xf32>
    %424 = arith.mulf %422, %423 : vector<2x32xf32>
    %425 = vector.broadcast %399 : vector<1x32xf32> to vector<2x32xf32>
    %426 = arith.addf %424, %425 : vector<2x32xf32>
    %cst_97 = arith.constant 5.000000e-01 : f32
    %427 = vector.broadcast %cst_97 : f32 to vector<2x32xf32>
    %428 = arith.mulf %427, %426 : vector<2x32xf32>
    %cst_98 = arith.constant 0.707106769 : f32
    %429 = vector.broadcast %cst_98 : f32 to vector<2x32xf32>
    %430 = arith.mulf %426, %429 : vector<2x32xf32>
    %cst_99 = arith.constant 0.000000e+00 : f32
    %431 = vector.broadcast %cst_99 : f32 to vector<2x32xf32>
    %432 = arith.cmpf oge, %430, %431 : vector<2x32xf32>
    %cst_100 = arith.constant 1.000000e+00 : f32
    %cst_101 = arith.constant -1.000000e+00 : f32
    %433 = vector.broadcast %cst_100 : f32 to vector<2x32xf32>
    %434 = vector.broadcast %cst_101 : f32 to vector<2x32xf32>
    %435 = arith.select %432, %433, %434 : vector<2x32xi1>, vector<2x32xf32>
    %436 = math.absf %430 : vector<2x32xf32>
    %cst_102 = arith.constant 0.327591091 : f32
    %437 = vector.broadcast %cst_102 : f32 to vector<2x32xf32>
    %438 = arith.mulf %437, %436 : vector<2x32xf32>
    %cst_103 = arith.constant 1.000000e+00 : f32
    %439 = vector.broadcast %cst_103 : f32 to vector<2x32xf32>
    %440 = arith.addf %439, %438 : vector<2x32xf32>
    %cst_104 = arith.constant 1.000000e+00 : f32
    %441 = vector.broadcast %cst_104 : f32 to vector<2x32xf32>
    %442 = arith.divf %441, %440 : vector<2x32xf32>
    %cst_105 = arith.constant 1.06140542 : f32
    %443 = vector.broadcast %cst_105 : f32 to vector<2x32xf32>
    %444 = arith.mulf %443, %442 : vector<2x32xf32>
    %cst_106 = arith.constant -1.45315206 : f32
    %445 = vector.broadcast %cst_106 : f32 to vector<2x32xf32>
    %446 = arith.addf %444, %445 : vector<2x32xf32>
    %447 = arith.mulf %446, %442 : vector<2x32xf32>
    %cst_107 = arith.constant 1.42141378 : f32
    %448 = vector.broadcast %cst_107 : f32 to vector<2x32xf32>
    %449 = arith.addf %447, %448 : vector<2x32xf32>
    %450 = arith.mulf %449, %442 : vector<2x32xf32>
    %cst_108 = arith.constant -0.284496725 : f32
    %451 = vector.broadcast %cst_108 : f32 to vector<2x32xf32>
    %452 = arith.addf %450, %451 : vector<2x32xf32>
    %453 = arith.mulf %452, %442 : vector<2x32xf32>
    %cst_109 = arith.constant 0.254829586 : f32
    %454 = vector.broadcast %cst_109 : f32 to vector<2x32xf32>
    %455 = arith.addf %453, %454 : vector<2x32xf32>
    %456 = arith.mulf %455, %442 : vector<2x32xf32>
    %cst_110 = arith.constant 0.000000e+00 : f32
    %457 = vector.broadcast %cst_110 : f32 to vector<2x32xf32>
    %458 = arith.subf %457, %436 : vector<2x32xf32>
    %459 = arith.mulf %458, %436 : vector<2x32xf32>
    %460 = math.exp %459 : vector<2x32xf32>
    %461 = arith.mulf %456, %460 : vector<2x32xf32>
    %cst_111 = arith.constant 1.000000e+00 : f32
    %462 = vector.broadcast %cst_111 : f32 to vector<2x32xf32>
    %463 = arith.subf %462, %461 : vector<2x32xf32>
    %464 = arith.mulf %435, %463 : vector<2x32xf32>
    %cst_112 = arith.constant 1.000000e+00 : f32
    %465 = vector.broadcast %cst_112 : f32 to vector<2x32xf32>
    %466 = arith.addf %465, %464 : vector<2x32xf32>
    %467 = arith.mulf %428, %466 : vector<2x32xf32>
    %cst_113 = arith.constant dense<0.000000e+00> : vector<2x3xf32>
    %468 = tpu.matmul %467, %400, %cst_113 {dimension_numbers = #tpu.dot_dimension_numbers<[1], [0], [0], [1], [0, 0, 1, 1], [], []>} : vector<2x32xf32>, vector<32x3xf32>, vector<2x3xf32> -> vector<2x3xf32>
    %469 = vector.broadcast %401 : vector<1x3xf32> to vector<2x3xf32>
    %470 = arith.addf %468, %469 : vector<2x3xf32>
    %c0_114 = arith.constant 0 : index
    %c0_115 = arith.constant 0 : index
    %471 = vector.load %arg3[%c0_114, %c0_115] : memref<2x3xf32, #tpu.memory_space<vmem>>, vector<2x3xf32>
    tpu.vector_store %arg3[%c0_114, %c0_115], %470 {strides = array<i32>} : memref<2x3xf32, #tpu.memory_space<vmem>>, vector<2x3xf32>,
    return
  }
  func.func @transform_0(%arg0: i32) -> (i32, i32) {
    %c0_i32 = arith.constant 0 : i32
    %c0_i32_0 = arith.constant 0 : i32
    %c0_i32_1 = arith.constant 0 : i32
    return %c0_i32, %c0_i32_0 : i32, i32
  }
  func.func @transform_1(%arg0: i32) -> (i32, i32) {
    %c0_i32 = arith.constant 0 : i32
    %c0_i32_0 = arith.constant 0 : i32
    %c0_i32_1 = arith.constant 0 : i32
    return %c0_i32, %c0_i32_0 : i32, i32
  }
  func.func @transform_2(%arg0: i32) -> (i32, i32) {
    %c0_i32 = arith.constant 0 : i32
    %c0_i32_0 = arith.constant 0 : i32
    %c0_i32_1 = arith.constant 0 : i32
    return %c0_i32, %c0_i32_0 : i32, i32
  }
}

</mosaic_0001>

<llo_original>
// kernel: hybrid_forward.1
$region0: #{hybrid_forward.1}
  #allocation0 [shape = 'u32[]', space=smem, size = 0x4, offset = 0x4, fixed_abs, tag = 'smem constant byte address 0x4 - core index']
  #allocation1 [shape = 'u32[144,128]{1,0:T(1,128)}', space=vmem, size = 0x12000, scoped, tag = 'internal scratch']
  #allocation2 [shape = 'f32[26,96]{1,0:T(8,128)}', space=vmem, size = 0x4000, scoped, tag = 'scratch operand']
  %s0 = inlined_call_operand.vmem [shape: f32[32,32], index: 0, kind: input, shape index: {}]
  %s1 = inlined_call_operand.hbm [shape: f32[272,128], index: 1, kind: input, shape index: {}]
  %s2 = inlined_call_operand.hbm [shape: f32[2,3], index: 2, kind: output, shape index: {}]
  %s3 = sld [smem:[#allocation0]]
  $region22: #{hybrid_forward.1} parent=0
    _
  %s5 = ssub.s32 1, %s3
  %s6 = scalar_select 0, %s5, %s3
  $region1: #{hybrid_forward.1} parent=0
    #allocation3 [shape = 'u8[139264]{0}', space=vmem, size = 0x22000, scoped, tag = 'input window, operand 1, single buffered']
    #allocation4 [shape = 's32[1]{0}', space=sflag, size = 0x4, scoped, tag = 'scoped memory for hybrid_forward.1']
    #allocation5 [shape = 's32[1]{0}', space=sflag, size = 0x4, scoped, tag = 'scoped memory for hybrid_forward.1']
    #allocation6 [shape = 'u8[1024]{0}', space=vmem, size = 0x400, scoped, tag = 'output window, operand 0, single buffered']
    %7 = vsyncpa [#allocation4], 0
    %8 = vsyncpa [#allocation5], 0
    // Predicated region
    $region2: #{hybrid_forward.1} parent=1 // pred_check
      _
    $region3: #{hybrid_forward.1} parent=1 // pred_check_branch
      %10 = sbr.rel (0) target = $region5
    $region4: #{hybrid_forward.1} parent=1 // pred_region
      _
    $region5: #{hybrid_forward.1} parent=1 // pred_fallthru
      _
    // Predicated region
    $region6: #{hybrid_forward.1} parent=1 // pred_check
      _
    $region7: #{hybrid_forward.1} parent=1 // pred_check_branch
      %12 = sbr.rel (0) target = $region9
    $region8: #{hybrid_forward.1} parent=1 // pred_region
      %s14 = ssub.s32 4352, 4352
      %15 = vsyncadd [#allocation4], %s14
      %s16 = sshll.u32 [#allocation3], 4
      %s17 = int_to_ptr.vmem [resolvable:$true] %s16
      %22 = dma.hbm_to_vmem [thread:$0]  %s1, 4352, %s17, [#allocation4], 128, 128, 8
    $region9: #{hybrid_forward.1} parent=1 // pred_fallthru
      _
    // Predicated region
    $region10: #{hybrid_forward.1} parent=1 // pred_check
      _
    $region11: #{hybrid_forward.1} parent=1 // pred_check_branch
      %24 = sbr.rel (0) target = $region13
    $region12: #{hybrid_forward.1} parent=1 // pred_region
      %25 = dma.done [#allocation4], 4352
    $region13: #{hybrid_forward.1} parent=1 // pred_fallthru
      _
    %v26 = vld [vmem:[#allocation3 + $0x100] sm:$0x1]
    %v27 = vld [vmem:[#allocation3 + $0x101] sm:$0x1]
    %v28 = vld [vmem:[%s0] sm:$0xff]
    %v29 = vld [vmem:[%s0 + $0x8] sm:$0xff]
    %v30 = vld [vmem:[%s0 + $0x10] sm:$0xff]
    %v31 = vld [vmem:[%s0 + $0x18] sm:$0xff]
    %vm32 = vcmask 261120
    %v33 = vsel %vm32, %v28, 0.0
    %v34 = vsel %vm32, %v29, 0.0
    %v35 = vadd.f32 %v33, %v34
    %v36 = vsel %vm32, %v30, 0.0
    %v37 = vadd.f32 %v35, %v36
    %v38 = vsel %vm32, %v31, 0.0
    %v39 = vadd.f32 %v37, %v38
    %v40 = vrot.slane %v39, 4
    %v41 = vadd.f32 %v39, %v40
    %v42 = vrot.slane %v41, 2
    %v43 = vadd.f32 %v41, %v42
    %v44 = vrot.slane %v43, 1
    %v45 = vadd.f32 %v43, %v44
    %v46 = vrcp.pop 32.0
    %v47 = vmul.f32 %v45, %v46
    %v48 = vsub.f32 %v28, %v47
    %v49 = vsub.f32 %v29, %v47
    %v50 = vsub.f32 %v30, %v47
    %v51 = vsub.f32 %v31, %v47
    %v52 = vmul.f32 %v48, %v48
    %v53 = vmul.f32 %v49, %v49
    %v54 = vmul.f32 %v50, %v50
    %v55 = vmul.f32 %v51, %v51
    %v56 = vsel %vm32, %v52, 0.0
    %v57 = vsel %vm32, %v53, 0.0
    %v58 = vadd.f32 %v56, %v57
    %v59 = vsel %vm32, %v54, 0.0
    %v60 = vadd.f32 %v58, %v59
    %v61 = vsel %vm32, %v55, 0.0
    %v62 = vadd.f32 %v60, %v61
    %v63 = vrot.slane %v62, 4
    %v64 = vadd.f32 %v62, %v63
    %v65 = vrot.slane %v64, 2
    %v66 = vadd.f32 %v64, %v65
    %v67 = vrot.slane %v66, 1
    %v68 = vadd.f32 %v66, %v67
    %v69 = vmul.f32 %v68, %v46
    %v70 = vadd.f32 %v69, 1e-05
    %v71 = vrsqrt.pop %v70
    %v72 = vmul.f32 %v26, %v71
    %v73 = vmul.f32 %v47, %v72
    %v74 = vsub.f32 %v27, %v73
    %v75 = vlaneseq
    %v76 = vshrl.u32 %v75, 7
    %v77 = vsub.s32 0, %v76
    %v78 = vrot.slane %v72, %v77
    %v79 = vmul.f32 %v28, %v78
    %v80 = vmul.f32 %v29, %v78
    %v81 = vmul.f32 %v30, %v78
    %v82 = vmul.f32 %v31, %v78
    %v83 = vlaneseq
    %v84 = vshrl.u32 %v83, 7
    %v85 = vsub.s32 0, %v84
    %v86 = vrot.slane %v74, %v85
    %v87 = vadd.f32 %v79, %v86
    %v88 = vadd.f32 %v80, %v86
    %v89 = vadd.f32 %v81, %v86
    %v90 = vadd.f32 %v82, %v86
    %vm95 = vcmask 1045504
    %v96 = vrot.slane %v87, 2
    %v97 = vrot.slane %v88, 2
    %v98 = vsel %vm95, %v96, %v97
    %v99 = vrot.slane %v89, 2
    %v100 = vsel %vm95, %v97, %v99
    %v101 = vrot.slane %v90, 2
    %v102 = vsel %vm95, %v99, %v101
    %103 = vrot.lane.b32.xlu0 %v98, 32
    %v104 = vpop.permute.xlu0 %103
    %105 = vrot.lane.b32.xlu0 %v100, 32
    %v106 = vpop.permute.xlu0 %105
    %107 = vrot.lane.b32.xlu0 %v102, 32
    %v108 = vpop.permute.xlu0 %107
    %109 = vrot.lane.b32.xlu0 %v101, 32
    %v110 = vpop.permute.xlu0 %109
    %vm115 = vcmask 1043456
    %v116 = vrot.slane %v87, 4
    %v117 = vrot.slane %v88, 4
    %v118 = vsel %vm115, %v116, %v117
    %v119 = vrot.slane %v89, 4
    %v120 = vsel %vm115, %v117, %v119
    %v121 = vrot.slane %v90, 4
    %v122 = vsel %vm115, %v119, %v121
    %123 = vrot.lane.b32.xlu0 %v118, 64
    %v124 = vpop.permute.xlu0 %123
    %125 = vrot.lane.b32.xlu0 %v120, 64
    %v126 = vpop.permute.xlu0 %125
    %127 = vrot.lane.b32.xlu0 %v122, 64
    %v128 = vpop.permute.xlu0 %127
    %129 = vrot.lane.b32.xlu0 %v121, 64
    %v130 = vpop.permute.xlu0 %129
    %vm135 = vcmask 1041408
    %v136 = vrot.slane %v87, 6
    %v137 = vrot.slane %v88, 6
    %v138 = vsel %vm135, %v136, %v137
    %v139 = vrot.slane %v89, 6
    %v140 = vsel %vm135, %v137, %v139
    %v141 = vrot.slane %v90, 6
    %v142 = vsel %vm135, %v139, %v141
    %143 = vrot.lane.b32.xlu0 %v138, 96
    %v144 = vpop.permute.xlu0 %143
    %145 = vrot.lane.b32.xlu0 %v140, 96
    %v146 = vpop.permute.xlu0 %145
    %147 = vrot.lane.b32.xlu0 %v142, 96
    %v148 = vpop.permute.xlu0 %147
    %149 = vrot.lane.b32.xlu0 %v141, 96
    %v150 = vpop.permute.xlu0 %149
    %v155 = vsel %vm32, %v87, %v104
    %v156 = vsel %vm32, %v88, %v106
    %v157 = vsel %vm32, %v89, %v108
    %v158 = vsel %vm32, %v90, %v110
    %vm159 = vcmask 523264
    %v160 = vsel %vm159, %v155, %v124
    %v161 = vsel %vm159, %v156, %v126
    %v162 = vsel %vm159, %v157, %v128
    %v163 = vsel %vm159, %v158, %v130
    %vm164 = vcmask 785408
    %v165 = vsel %vm164, %v160, %v144
    %v166 = vsel %vm164, %v161, %v146
    %v167 = vsel %vm164, %v162, %v148
    %v168 = vsel %vm164, %v163, %v150
    %v169 = vld [vmem:[#allocation3] sm:$0xff]
    %v170 = vld [vmem:[#allocation3 + $0x8] sm:$0xff]
    %v171 = vld [vmem:[#allocation3 + $0x10] sm:$0xff]
    %v172 = vld [vmem:[#allocation3 + $0x18] sm:$0xff]
    %v173 = vld [vmem:[#allocation3 + $0x20] sm:$0xff]
    %v174 = vld [vmem:[#allocation3 + $0x28] sm:$0xff]
    %v175 = vld [vmem:[#allocation3 + $0x30] sm:$0xff]
    %v176 = vld [vmem:[#allocation3 + $0x38] sm:$0xff]
    %v177 = vld [vmem:[#allocation3 + $0x40] sm:$0xff]
    %v178 = vld [vmem:[#allocation3 + $0x48] sm:$0xff]
    %v179 = vld [vmem:[#allocation3 + $0x50] sm:$0xff]
    %v180 = vld [vmem:[#allocation3 + $0x58] sm:$0xff]
    %v181 = vld [vmem:[#allocation3 + $0x60] sm:$0xff]
    %v182 = vld [vmem:[#allocation3 + $0x68] sm:$0xff]
    %v183 = vld [vmem:[#allocation3 + $0x70] sm:$0xff]
    %v184 = vld [vmem:[#allocation3 + $0x78] sm:$0xff]
    %v185 = vld [vmem:[#allocation3 + $0x102] sm:$0x1]
    %v186 = vlaneseq
    %v187 = vshrl.u32 %v186, 7
    %v188 = vsub.s32 0, %v187
    %v189 = vrot.slane %v185, %v188
    %190 = vmatprep.subr.mxu0 0.0
    %191 = vmatpush1.msra.mxu0 %v184
    %192 = vmatprep.subr.mxu0 0.0
    %193 = vmatpush1.msra.mxu0 %v183
    %194 = vmatprep.subr.mxu0 0.0
    %195 = vmatpush1.msra.mxu0 %v182
    %196 = vmatprep.subr.mxu0 0.0
    %197 = vmatpush1.msra.mxu0 %v181
    %198 = vmatprep.subr.mxu0 0.0
    %199 = vmatpush1.msra.mxu0 %v180
    %200 = vmatprep.subr.mxu0 0.0
    %201 = vmatpush1.msra.mxu0 %v179
    %202 = vmatprep.subr.mxu0 0.0
    %203 = vmatpush1.msra.mxu0 %v178
    %204 = vmatprep.subr.mxu0 0.0
    %205 = vmatpush1.msra.mxu0 %v177
    %206 = vmatprep.subr.mxu0 0.0
    %207 = vmatpush1.msra.mxu0 %v176
    %208 = vmatprep.subr.mxu0 0.0
    %209 = vmatpush1.msra.mxu0 %v175
    %210 = vmatprep.subr.mxu0 0.0
    %211 = vmatpush1.msra.mxu0 %v174
    %212 = vmatprep.subr.mxu0 0.0
    %213 = vmatpush1.msra.mxu0 %v173
    %214 = vmatprep.subr.mxu0 0.0
    %215 = vmatpush1.msra.mxu0 %v172
    %216 = vmatprep.subr.mxu0 0.0
    %217 = vmatpush1.msra.mxu0 %v171
    %218 = vmatprep.subr.mxu0 0.0
    %219 = vmatpush1.msra.mxu0 %v170
    %220 = vmatprep.subr.mxu0 0.0
    %221 = vmatpush1.msra.mxu0 %v169
    %222 = vmatprep.subr.mxu0 0.0
    %223 = vmatpush2.msra.mxu0 0.0
    %224 = vmatprep.subr.mxu0 0.0
    %225 = vmatpush2.msra.mxu0 0.0
    %226 = vmatprep.subr.mxu0 0.0
    %227 = vmatpush2.msra.mxu0 0.0
    %228 = vmatprep.subr.mxu0 0.0
    %229 = vmatpush2.msra.mxu0 0.0
    %230 = vmatprep.subr.mxu0 0.0
    %231 = vmatpush2.msra.mxu0 0.0
    %232 = vmatprep.subr.mxu0 0.0
    %233 = vmatpush2.msra.mxu0 0.0
    %234 = vmatprep.subr.mxu0 0.0
    %235 = vmatpush2.msra.mxu0 0.0
    %236 = vmatprep.subr.mxu0 0.0
    %237 = vmatpush2.msra.mxu0 0.0
    %238 = vmatprep.subr.mxu0 0.0
    %239 = vmatpush2.msra.mxu0 0.0
    %240 = vmatprep.subr.mxu0 0.0
    %241 = vmatpush2.msra.mxu0 0.0
    %242 = vmatprep.subr.mxu0 0.0
    %243 = vmatpush2.msra.mxu0 0.0
    %244 = vmatprep.subr.mxu0 0.0
    %245 = vmatpush2.msra.mxu0 0.0
    %246 = vmatprep.subr.mxu0 0.0
    %247 = vmatpush2.msra.mxu0 0.0
    %248 = vmatprep.subr.mxu0 0.0
    %249 = vmatpush2.msra.mxu0 0.0
    %250 = vmatprep.subr.mxu0 0.0
    %251 = vmatpush2.msra.mxu0 0.0
    %252 = vmatprep.subr.mxu0 0.0
    %253 = vmatpush2.msra.mxu0 0.0
    %254 = vmatprep.mubr.f32.mxu0 0.0
    %255 = vmatmul.mubr.f32.gmra.mxu0 %v165
    %v256 = vpop.f32.mrf.mxu0
    %v257 = vadd.f32 %v189, %v256
    %v258 = vpop.f32.mrf.mxu0
    %259 = vmatprep.mubr.f32.mxu0 0.0
    %260 = vmatmul.mubr.f32.gmra.mxu0 %v166
    %v261 = vpop.f32.mrf.mxu0
    %v262 = vadd.f32 %v189, %v261
    %v263 = vpop.f32.mrf.mxu0
    %264 = vmatprep.mubr.f32.mxu0 0.0
    %265 = vmatmul.mubr.f32.gmra.mxu0 %v167
    %v266 = vpop.f32.mrf.mxu0
    %v267 = vadd.f32 %v189, %v266
    %v268 = vpop.f32.mrf.mxu0
    %269 = vmatprep.mubr.f32.mxu0 0.0
    %270 = vmatmul.mubr.f32.gmra.mxu0 %v168
    %v271 = vpop.f32.mrf.mxu0
    %v272 = vadd.f32 %v189, %v271
    %v273 = vpop.f32.mrf.mxu0
    %274 = vdwg.mxu0
    %v275 = vmax.f32 %v257, 0.0
    %v276 = vmax.f32 %v262, 0.0
    %v277 = vmax.f32 %v267, 0.0
    %v278 = vmax.f32 %v272, 0.0
    %v279 = vld [vmem:[#allocation3 + $0x80] sm:$0xff]
    %v280 = vld [vmem:[#allocation3 + $0x88] sm:$0xff]
    %v281 = vld [vmem:[#allocation3 + $0x90] sm:$0xff]
    %v282 = vld [vmem:[#allocation3 + $0x98] sm:$0xff]
    %v283 = vld [vmem:[#allocation3 + $0x103] sm:$0x1]
    %v284 = vlaneseq
    %v285 = vshrl.u32 %v284, 7
    %v286 = vsub.s32 0, %v285
    %v287 = vrot.slane %v283, %v286
    %v289 = vsel %vm32, %v275, 0
    %v292 = vsel %vm32, %v276, 0
    %v295 = vsel %vm32, %v277, 0
    %v298 = vsel %vm32, %v278, 0
    %300 = vmatprep.subr.mxu0 0.0
    %301 = vmatpush1.msra.mxu0 0.0
    %302 = vmatprep.subr.mxu0 0.0
    %303 = vmatpush1.msra.mxu0 0.0
    %304 = vmatprep.subr.mxu0 0.0
    %305 = vmatpush1.msra.mxu0 0.0
    %306 = vmatprep.subr.mxu0 0.0
    %307 = vmatpush1.msra.mxu0 0.0
    %308 = vmatprep.subr.mxu0 0.0
    %309 = vmatpush1.msra.mxu0 0.0
    %310 = vmatprep.subr.mxu0 0.0
    %311 = vmatpush1.msra.mxu0 0.0
    %312 = vmatprep.subr.mxu0 0.0
    %313 = vmatpush1.msra.mxu0 0.0
    %314 = vmatprep.subr.mxu0 0.0
    %315 = vmatpush1.msra.mxu0 0.0
    %316 = vmatprep.subr.mxu0 0.0
    %317 = vmatpush1.msra.mxu0 0.0
    %318 = vmatprep.subr.mxu0 0.0
    %319 = vmatpush1.msra.mxu0 0.0
    %320 = vmatprep.subr.mxu0 0.0
    %321 = vmatpush1.msra.mxu0 0.0
    %322 = vmatprep.subr.mxu0 0.0
    %323 = vmatpush1.msra.mxu0 0.0
    %324 = vmatprep.subr.mxu0 0.0
    %325 = vmatpush1.msra.mxu0 %v282
    %326 = vmatprep.subr.mxu0 0.0
    %327 = vmatpush1.msra.mxu0 %v281
    %328 = vmatprep.subr.mxu0 0.0
    %329 = vmatpush1.msra.mxu0 %v280
    %330 = vmatprep.subr.mxu0 0.0
    %331 = vmatpush1.msra.mxu0 %v279
    %332 = vmatprep.subr.mxu0 0.0
    %333 = vmatpush2.msra.mxu0 0.0
    %334 = vmatprep.subr.mxu0 0.0
    %335 = vmatpush2.msra.mxu0 0.0
    %336 = vmatprep.subr.mxu0 0.0
    %337 = vmatpush2.msra.mxu0 0.0
    %338 = vmatprep.subr.mxu0 0.0
    %339 = vmatpush2.msra.mxu0 0.0
    %340 = vmatprep.subr.mxu0 0.0
    %341 = vmatpush2.msra.mxu0 0.0
    %342 = vmatprep.subr.mxu0 0.0
    %343 = vmatpush2.msra.mxu0 0.0
    %344 = vmatprep.subr.mxu0 0.0
    %345 = vmatpush2.msra.mxu0 0.0
    %346 = vmatprep.subr.mxu0 0.0
    %347 = vmatpush2.msra.mxu0 0.0
    %348 = vmatprep.subr.mxu0 0.0
    %349 = vmatpush2.msra.mxu0 0.0
    %350 = vmatprep.subr.mxu0 0.0
    %351 = vmatpush2.msra.mxu0 0.0
    %352 = vmatprep.subr.mxu0 0.0
    %353 = vmatpush2.msra.mxu0 0.0
    %354 = vmatprep.subr.mxu0 0.0
    %355 = vmatpush2.msra.mxu0 0.0
    %356 = vmatprep.subr.mxu0 0.0
    %357 = vmatpush2.msra.mxu0 0.0
    %358 = vmatprep.subr.mxu0 0.0
    %359 = vmatpush2.msra.mxu0 0.0
    %360 = vmatprep.subr.mxu0 0.0
    %361 = vmatpush2.msra.mxu0 0.0
    %362 = vmatprep.subr.mxu0 0.0
    %363 = vmatpush2.msra.mxu0 0.0
    %364 = vmatprep.mubr.f32.mxu0 0.0
    %365 = vmatmul.mubr.f32.gmra.mxu0 %v289
    %v366 = vpop.f32.mrf.mxu0
    %v367 = vadd.f32 %v287, %v366
    %v368 = vpop.f32.mrf.mxu0
    %369 = vmatprep.mubr.f32.mxu0 0.0
    %370 = vmatmul.mubr.f32.gmra.mxu0 %v292
    %v371 = vpop.f32.mrf.mxu0
    %v372 = vadd.f32 %v287, %v371
    %v373 = vpop.f32.mrf.mxu0
    %374 = vmatprep.mubr.f32.mxu0 0.0
    %375 = vmatmul.mubr.f32.gmra.mxu0 %v295
    %v376 = vpop.f32.mrf.mxu0
    %v377 = vadd.f32 %v287, %v376
    %v378 = vpop.f32.mrf.mxu0
    %379 = vmatprep.mubr.f32.mxu0 0.0
    %380 = vmatmul.mubr.f32.gmra.mxu0 %v298
    %v381 = vpop.f32.mrf.mxu0
    %v382 = vadd.f32 %v287, %v381
    %v383 = vpop.f32.mrf.mxu0
    %384 = vdwg.mxu0
    %385 = vst.msk [vmem:[#allocation2] sm:$0xff] %vm164, %v367
    %386 = vst.msk [vmem:[#allocation2 + $0x8] sm:$0xff] %vm164, %v372
    %387 = vst.msk [vmem:[#allocation2 + $0x10] sm:$0xff] %vm164, %v377
    %vm388 = vcmask 779264
    %389 = vst.msk [vmem:[#allocation2 + $0x18] sm:$0x3] %vm388, %v382
    %v390 = vld [vmem:[#allocation3 + $0xa0] sm:$0xff]
    %v391 = vld [vmem:[#allocation3 + $0xa8] sm:$0xff]
    %v392 = vld [vmem:[#allocation3 + $0xb0] sm:$0xff]
    %v393 = vld [vmem:[#allocation3 + $0xb8] sm:$0xff]
    %v394 = vld [vmem:[#allocation3 + $0x104] sm:$0x1]
    %v395 = vld [vmem:[#allocation2] sm:$0x3]
    %v396 = vlaneseq
    %v397 = vshrl.u32 %v396, 7
    %v398 = vsub.s32 0, %v397
    %v399 = vrot.slane %v394, %v398
    %v401 = vsel %vm32, 0.0, 0
    %403 = vmatprep.subr.mxu0 0.0
    %404 = vmatpush1.msra.mxu0 0.0
    %405 = vmatprep.subr.mxu0 0.0
    %406 = vmatpush1.msra.mxu0 0.0
    %407 = vmatprep.subr.mxu0 0.0
    %408 = vmatpush1.msra.mxu0 0.0
    %409 = vmatprep.subr.mxu0 0.0
    %410 = vmatpush1.msra.mxu0 0.0
    %411 = vmatprep.subr.mxu0 0.0
    %412 = vmatpush1.msra.mxu0 0.0
    %413 = vmatprep.subr.mxu0 0.0
    %414 = vmatpush1.msra.mxu0 0.0
    %415 = vmatprep.subr.mxu0 0.0
    %416 = vmatpush1.msra.mxu0 0.0
    %417 = vmatprep.subr.mxu0 0.0
    %418 = vmatpush1.msra.mxu0 0.0
    %419 = vmatprep.subr.mxu0 0.0
    %420 = vmatpush1.msra.mxu0 0.0
    %421 = vmatprep.subr.mxu0 0.0
    %422 = vmatpush1.msra.mxu0 0.0
    %423 = vmatprep.subr.mxu0 0.0
    %424 = vmatpush1.msra.mxu0 0.0
    %425 = vmatprep.subr.mxu0 0.0
    %426 = vmatpush1.msra.mxu0 0.0
    %427 = vmatprep.subr.mxu0 0.0
    %428 = vmatpush1.msra.mxu0 %v393
    %429 = vmatprep.subr.mxu0 0.0
    %430 = vmatpush1.msra.mxu0 %v392
    %431 = vmatprep.subr.mxu0 0.0
    %432 = vmatpush1.msra.mxu0 %v391
    %433 = vmatprep.subr.mxu0 0.0
    %434 = vmatpush1.msra.mxu0 %v390
    %435 = vmatprep.subr.mxu0 0.0
    %436 = vmatpush2.msra.mxu0 0.0
    %437 = vmatprep.subr.mxu0 0.0
    %438 = vmatpush2.msra.mxu0 0.0
    %439 = vmatprep.subr.mxu0 0.0
    %440 = vmatpush2.msra.mxu0 0.0
    %441 = vmatprep.subr.mxu0 0.0
    %442 = vmatpush2.msra.mxu0 0.0
    %443 = vmatprep.subr.mxu0 0.0
    %444 = vmatpush2.msra.mxu0 0.0
    %445 = vmatprep.subr.mxu0 0.0
    %446 = vmatpush2.msra.mxu0 0.0
    %447 = vmatprep.subr.mxu0 0.0
    %448 = vmatpush2.msra.mxu0 0.0
    %449 = vmatprep.subr.mxu0 0.0
    %450 = vmatpush2.msra.mxu0 0.0
    %451 = vmatprep.subr.mxu0 0.0
    %452 = vmatpush2.msra.mxu0 0.0
    %453 = vmatprep.subr.mxu0 0.0
    %454 = vmatpush2.msra.mxu0 0.0
    %455 = vmatprep.subr.mxu0 0.0
    %456 = vmatpush2.msra.mxu0 0.0
    %457 = vmatprep.subr.mxu0 0.0
    %458 = vmatpush2.msra.mxu0 0.0
    %459 = vmatprep.subr.mxu0 0.0
    %460 = vmatpush2.msra.mxu0 0.0
    %461 = vmatprep.subr.mxu0 0.0
    %462 = vmatpush2.msra.mxu0 0.0
    %463 = vmatprep.subr.mxu0 0.0
    %464 = vmatpush2.msra.mxu0 0.0
    %465 = vmatprep.subr.mxu0 0.0
    %466 = vmatpush2.msra.mxu0 0.0
    %467 = vmatprep.mubr.f32.mxu0 0.0
    %468 = vmatmul.mubr.f32.gmra.mxu0 %v401
    %v469 = vpop.f32.mrf.mxu0
    %v470 = vadd.f32 %v399, %v469
    %v471 = vpop.f32.mrf.mxu0
    %472 = vdwg.mxu0
    %v473 = vadd.f32 %v395, %v470
    %v474 = vxor.u32 %v473, 2147483648
    %v475 = vmul.f32 %v474, 1.442695
    %v476 = vpow.pop %v475
    %v477 = vadd.f32 %v476, 1.0
    %v478 = vrcp.pop %v477
    %v479 = vmul.f32 1.0, %v478
    %481 = vrot.lane.b32.xlu0 %v470, 64
    %v482 = vpop.permute.xlu0 %481
    %v484 = vmul.f32 %v479, %v482
    %486 = vrot.lane.b32.xlu0 %v484, 64
    %v487 = vpop.permute.xlu0 %486
    %v489 = vadd.f32 %v395, %v487
    %v490 = vtanh.pop %v489
    %v491 = vsub.f32 1.0, %v479
    %493 = vrot.lane.b32.xlu0 %v490, 96
    %v494 = vpop.permute.xlu0 %493
    %v496 = vmul.f32 %v491, %v494
    %v497 = vmul.f32 %v479, 0.0
    %v498 = vadd.f32 %v496, %v497
    %s499 = scalar_lea.vmem [#allocation2], 2
    %v500 = vld [vmem:[%s499] sm:$0x3]
    %502 = vrot.lane.b32.xlu0 %v498, 96
    %v503 = vpop.permute.xlu0 %502
    %v504 = vsel %vm32, %v503, 0
    %506 = vmatprep.subr.mxu0 0.0
    %507 = vmatpush1.msra.mxu0 0.0
    %508 = vmatprep.subr.mxu0 0.0
    %509 = vmatpush1.msra.mxu0 0.0
    %510 = vmatprep.subr.mxu0 0.0
    %511 = vmatpush1.msra.mxu0 0.0
    %512 = vmatprep.subr.mxu0 0.0
    %513 = vmatpush1.msra.mxu0 0.0
    %514 = vmatprep.subr.mxu0 0.0
    %515 = vmatpush1.msra.mxu0 0.0
    %516 = vmatprep.subr.mxu0 0.0
    %517 = vmatpush1.msra.mxu0 0.0
    %518 = vmatprep.subr.mxu0 0.0
    %519 = vmatpush1.msra.mxu0 0.0
    %520 = vmatprep.subr.mxu0 0.0
    %521 = vmatpush1.msra.mxu0 0.0
    %522 = vmatprep.subr.mxu0 0.0
    %523 = vmatpush1.msra.mxu0 0.0
    %524 = vmatprep.subr.mxu0 0.0
    %525 = vmatpush1.msra.mxu0 0.0
    %526 = vmatprep.subr.mxu0 0.0
    %527 = vmatpush1.msra.mxu0 0.0
    %528 = vmatprep.subr.mxu0 0.0
    %529 = vmatpush1.msra.mxu0 0.0
    %530 = vmatprep.subr.mxu0 0.0
    %531 = vmatpush1.msra.mxu0 %v393
    %532 = vmatprep.subr.mxu0 0.0
    %533 = vmatpush1.msra.mxu0 %v392
    %534 = vmatprep.subr.mxu0 0.0
    %535 = vmatpush1.msra.mxu0 %v391
    %536 = vmatprep.subr.mxu0 0.0
    %537 = vmatpush1.msra.mxu0 %v390
    %538 = vmatprep.subr.mxu0 0.0
    %539 = vmatpush2.msra.mxu0 0.0
    %540 = vmatprep.subr.mxu0 0.0
    %541 = vmatpush2.msra.mxu0 0.0
    %542 = vmatprep.subr.mxu0 0.0
    %543 = vmatpush2.msra.mxu0 0.0
    %544 = vmatprep.subr.mxu0 0.0
    %545 = vmatpush2.msra.mxu0 0.0
    %546 = vmatprep.subr.mxu0 0.0
    %547 = vmatpush2.msra.mxu0 0.0
    %548 = vmatprep.subr.mxu0 0.0
    %549 = vmatpush2.msra.mxu0 0.0
    %550 = vmatprep.subr.mxu0 0.0
    %551 = vmatpush2.msra.mxu0 0.0
    %552 = vmatprep.subr.mxu0 0.0
    %553 = vmatpush2.msra.mxu0 0.0
    %554 = vmatprep.subr.mxu0 0.0
    %555 = vmatpush2.msra.mxu0 0.0
    %556 = vmatprep.subr.mxu0 0.0
    %557 = vmatpush2.msra.mxu0 0.0
    %558 = vmatprep.subr.mxu0 0.0
    %559 = vmatpush2.msra.mxu0 0.0
    %560 = vmatprep.subr.mxu0 0.0
    %561 = vmatpush2.msra.mxu0 0.0
    %562 = vmatprep.subr.mxu0 0.0
    %563 = vmatpush2.msra.mxu0 0.0
    %564 = vmatprep.subr.mxu0 0.0
    %565 = vmatpush2.msra.mxu0 0.0
    %566 = vmatprep.subr.mxu0 0.0
    %567 = vmatpush2.msra.mxu0 0.0
    %568 = vmatprep.subr.mxu0 0.0
    %569 = vmatpush2.msra.mxu0 0.0
    %570 = vmatprep.mubr.f32.mxu0 0.0
    %571 = vmatmul.mubr.f32.gmra.mxu0 %v504
    %v572 = vpop.f32.mrf.mxu0
    %v573 = vadd.f32 %v399, %v572
    %v574 = vpop.f32.mrf.mxu0
    %575 = vdwg.mxu0
    %v576 = vadd.f32 %v500, %v573
    %v577 = vxor.u32 %v576, 2147483648
    %v578 = vmul.f32 %v577, 1.442695
    %v579 = vpow.pop %v578
    %v580 = vadd.f32 %v579, 1.0
    %v581 = vrcp.pop %v580
    %v582 = vmul.f32 1.0, %v581
    %584 = vrot.lane.b32.xlu0 %v573, 64
    %v585 = vpop.permute.xlu0 %584
    %v587 = vmul.f32 %v582, %v585
    %589 = vrot.lane.b32.xlu0 %v587, 64
    %v590 = vpop.permute.xlu0 %589
    %v592 = vadd.f32 %v500, %v590
    %v593 = vtanh.pop %v592
    %v594 = vsub.f32 1.0, %v582
    %596 = vrot.lane.b32.xlu0 %v593, 96
    %v597 = vpop.permute.xlu0 %596
    %v599 = vmul.f32 %v594, %v597
    %v600 = vmul.f32 %v582, %v498
    %v601 = vadd.f32 %v599, %v600
    %s602 = scalar_lea.vmem [#allocation2], 4
    %v603 = vld [vmem:[%s602] sm:$0x3]
    %605 = vrot.lane.b32.xlu0 %v601, 96
    %v606 = vpop.permute.xlu0 %605
    %v607 = vsel %vm32, %v606, 0
    %609 = vmatprep.subr.mxu0 0.0
    %610 = vmatpush1.msra.mxu0 0.0
    %611 = vmatprep.subr.mxu0 0.0
    %612 = vmatpush1.msra.mxu0 0.0
    %613 = vmatprep.subr.mxu0 0.0
    %614 = vmatpush1.msra.mxu0 0.0
    %615 = vmatprep.subr.mxu0 0.0
    %616 = vmatpush1.msra.mxu0 0.0
    %617 = vmatprep.subr.mxu0 0.0
    %618 = vmatpush1.msra.mxu0 0.0
    %619 = vmatprep.subr.mxu0 0.0
    %620 = vmatpush1.msra.mxu0 0.0
    %621 = vmatprep.subr.mxu0 0.0
    %622 = vmatpush1.msra.mxu0 0.0
    %623 = vmatprep.subr.mxu0 0.0
    %624 = vmatpush1.msra.mxu0 0.0
    %625 = vmatprep.subr.mxu0 0.0
    %626 = vmatpush1.msra.mxu0 0.0
    %627 = vmatprep.subr.mxu0 0.0
    %628 = vmatpush1.msra.mxu0 0.0
    %629 = vmatprep.subr.mxu0 0.0
    %630 = vmatpush1.msra.mxu0 0.0
    %631 = vmatprep.subr.mxu0 0.0
    %632 = vmatpush1.msra.mxu0 0.0
    %633 = vmatprep.subr.mxu0 0.0
    %634 = vmatpush1.msra.mxu0 %v393
    %635 = vmatprep.subr.mxu0 0.0
    %636 = vmatpush1.msra.mxu0 %v392
    %637 = vmatprep.subr.mxu0 0.0
    %638 = vmatpush1.msra.mxu0 %v391
    %639 = vmatprep.subr.mxu0 0.0
    %640 = vmatpush1.msra.mxu0 %v390
    %641 = vmatprep.subr.mxu0 0.0
    %642 = vmatpush2.msra.mxu0 0.0
    %643 = vmatprep.subr.mxu0 0.0
    %644 = vmatpush2.msra.mxu0 0.0
    %645 = vmatprep.subr.mxu0 0.0
    %646 = vmatpush2.msra.mxu0 0.0
    %647 = vmatprep.subr.mxu0 0.0
    %648 = vmatpush2.msra.mxu0 0.0
    %649 = vmatprep.subr.mxu0 0.0
    %650 = vmatpush2.msra.mxu0 0.0
    %651 = vmatprep.subr.mxu0 0.0
    %652 = vmatpush2.msra.mxu0 0.0
    %653 = vmatprep.subr.mxu0 0.0
    %654 = vmatpush2.msra.mxu0 0.0
    %655 = vmatprep.subr.mxu0 0.0
    %656 = vmatpush2.msra.mxu0 0.0
    %657 = vmatprep.subr.mxu0 0.0
    %658 = vmatpush2.msra.mxu0 0.0
    %659 = vmatprep.subr.mxu0 0.0
    %660 = vmatpush2.msra.mxu0 0.0
    %661 = vmatprep.subr.mxu0 0.0
    %662 = vmatpush2.msra.mxu0 0.0
    %663 = vmatprep.subr.mxu0 0.0
    %664 = vmatpush2.msra.mxu0 0.0
    %665 = vmatprep.subr.mxu0 0.0
    %666 = vmatpush2.msra.mxu0 0.0
    %667 = vmatprep.subr.mxu0 0.0
    %668 = vmatpush2.msra.mxu0 0.0
    %669 = vmatprep.subr.mxu0 0.0
    %670 = vmatpush2.msra.mxu0 0.0
    %671 = vmatprep.subr.mxu0 0.0
    %672 = vmatpush2.msra.mxu0 0.0
    %673 = vmatprep.mubr.f32.mxu0 0.0
    %674 = vmatmul.mubr.f32.gmra.mxu0 %v607
    %v675 = vpop.f32.mrf.mxu0
    %v676 = vadd.f32 %v399, %v675
    %v677 = vpop.f32.mrf.mxu0
    %678 = vdwg.mxu0
    %v679 = vadd.f32 %v603, %v676
    %v680 = vxor.u32 %v679, 2147483648
    %v681 = vmul.f32 %v680, 1.442695
    %v682 = vpow.pop %v681
    %v683 = vadd.f32 %v682, 1.0
    %v684 = vrcp.pop %v683
    %v685 = vmul.f32 1.0, %v684
    %687 = vrot.lane.b32.xlu0 %v676, 64
    %v688 = vpop.permute.xlu0 %687
    %v690 = vmul.f32 %v685, %v688
    %692 = vrot.lane.b32.xlu0 %v690, 64
    %v693 = vpop.permute.xlu0 %692
    %v695 = vadd.f32 %v603, %v693
    %v696 = vtanh.pop %v695
    %v697 = vsub.f32 1.0, %v685
    %699 = vrot.lane.b32.xlu0 %v696, 96
    %v700 = vpop.permute.xlu0 %699
    %v702 = vmul.f32 %v697, %v700
    %v703 = vmul.f32 %v685, %v601
    %v704 = vadd.f32 %v702, %v703
    %s705 = scalar_lea.vmem [#allocation2], 6
    %v706 = vld [vmem:[%s705] sm:$0x3]
    %708 = vrot.lane.b32.xlu0 %v704, 96
    %v709 = vpop.permute.xlu0 %708
    %v710 = vsel %vm32, %v709, 0
    %712 = vmatprep.subr.mxu0 0.0
    %713 = vmatpush1.msra.mxu0 0.0
    %714 = vmatprep.subr.mxu0 0.0
    %715 = vmatpush1.msra.mxu0 0.0
    %716 = vmatprep.subr.mxu0 0.0
    %717 = vmatpush1.msra.mxu0 0.0
    %718 = vmatprep.subr.mxu0 0.0
    %719 = vmatpush1.msra.mxu0 0.0
    %720 = vmatprep.subr.mxu0 0.0
    %721 = vmatpush1.msra.mxu0 0.0
    %722 = vmatprep.subr.mxu0 0.0
    %723 = vmatpush1.msra.mxu0 0.0
    %724 = vmatprep.subr.mxu0 0.0
    %725 = vmatpush1.msra.mxu0 0.0
    %726 = vmatprep.subr.mxu0 0.0
    %727 = vmatpush1.msra.mxu0 0.0
    %728 = vmatprep.subr.mxu0 0.0
    %729 = vmatpush1.msra.mxu0 0.0
    %730 = vmatprep.subr.mxu0 0.0
    %731 = vmatpush1.msra.mxu0 0.0
    %732 = vmatprep.subr.mxu0 0.0
    %733 = vmatpush1.msra.mxu0 0.0
    %734 = vmatprep.subr.mxu0 0.0
    %735 = vmatpush1.msra.mxu0 0.0
    %736 = vmatprep.subr.mxu0 0.0
    %737 = vmatpush1.msra.mxu0 %v393
    %738 = vmatprep.subr.mxu0 0.0
    %739 = vmatpush1.msra.mxu0 %v392
    %740 = vmatprep.subr.mxu0 0.0
    %741 = vmatpush1.msra.mxu0 %v391
    %742 = vmatprep.subr.mxu0 0.0
    %743 = vmatpush1.msra.mxu0 %v390
    %744 = vmatprep.subr.mxu0 0.0
    %745 = vmatpush2.msra.mxu0 0.0
    %746 = vmatprep.subr.mxu0 0.0
    %747 = vmatpush2.msra.mxu0 0.0
    %748 = vmatprep.subr.mxu0 0.0
    %749 = vmatpush2.msra.mxu0 0.0
    %750 = vmatprep.subr.mxu0 0.0
    %751 = vmatpush2.msra.mxu0 0.0
    %752 = vmatprep.subr.mxu0 0.0
    %753 = vmatpush2.msra.mxu0 0.0
    %754 = vmatprep.subr.mxu0 0.0
    %755 = vmatpush2.msra.mxu0 0.0
    %756 = vmatprep.subr.mxu0 0.0
    %757 = vmatpush2.msra.mxu0 0.0
    %758 = vmatprep.subr.mxu0 0.0
    %759 = vmatpush2.msra.mxu0 0.0
    %760 = vmatprep.subr.mxu0 0.0
    %761 = vmatpush2.msra.mxu0 0.0
    %762 = vmatprep.subr.mxu0 0.0
    %763 = vmatpush2.msra.mxu0 0.0
    %764 = vmatprep.subr.mxu0 0.0
    %765 = vmatpush2.msra.mxu0 0.0
    %766 = vmatprep.subr.mxu0 0.0
    %767 = vmatpush2.msra.mxu0 0.0
    %768 = vmatprep.subr.mxu0 0.0
    %769 = vmatpush2.msra.mxu0 0.0
    %770 = vmatprep.subr.mxu0 0.0
    %771 = vmatpush2.msra.mxu0 0.0
    %772 = vmatprep.subr.mxu0 0.0
    %773 = vmatpush2.msra.mxu0 0.0
    %774 = vmatprep.subr.mxu0 0.0
    %775 = vmatpush2.msra.mxu0 0.0
    %776 = vmatprep.mubr.f32.mxu0 0.0
    %777 = vmatmul.mubr.f32.gmra.mxu0 %v710
    %v778 = vpop.f32.mrf.mxu0
    %v779 = vadd.f32 %v399, %v778
    %v780 = vpop.f32.mrf.mxu0
    %781 = vdwg.mxu0
    %v782 = vadd.f32 %v706, %v779
    %v783 = vxor.u32 %v782, 2147483648
    %v784 = vmul.f32 %v783, 1.442695
    %v785 = vpow.pop %v784
    %v786 = vadd.f32 %v785, 1.0
    %v787 = vrcp.pop %v786
    %v788 = vmul.f32 1.0, %v787
    %790 = vrot.lane.b32.xlu0 %v779, 64
    %v791 = vpop.permute.xlu0 %790
    %v793 = vmul.f32 %v788, %v791
    %795 = vrot.lane.b32.xlu0 %v793, 64
    %v796 = vpop.permute.xlu0 %795
    %v798 = vadd.f32 %v706, %v796
    %v799 = vtanh.pop %v798
    %v800 = vsub.f32 1.0, %v788
    %802 = vrot.lane.b32.xlu0 %v799, 96
    %v803 = vpop.permute.xlu0 %802
    %v805 = vmul.f32 %v800, %v803
    %v806 = vmul.f32 %v788, %v704
    %v807 = vadd.f32 %v805, %v806
    %s808 = scalar_lea.vmem [#allocation2], 8
    %v809 = vld [vmem:[%s808] sm:$0x3]
    %811 = vrot.lane.b32.xlu0 %v807, 96
    %v812 = vpop.permute.xlu0 %811
    %v813 = vsel %vm32, %v812, 0
    %815 = vmatprep.subr.mxu0 0.0
    %816 = vmatpush1.msra.mxu0 0.0
    %817 = vmatprep.subr.mxu0 0.0
    %818 = vmatpush1.msra.mxu0 0.0
    %819 = vmatprep.subr.mxu0 0.0
    %820 = vmatpush1.msra.mxu0 0.0
    %821 = vmatprep.subr.mxu0 0.0
    %822 = vmatpush1.msra.mxu0 0.0
    %823 = vmatprep.subr.mxu0 0.0
    %824 = vmatpush1.msra.mxu0 0.0
    %825 = vmatprep.subr.mxu0 0.0
    %826 = vmatpush1.msra.mxu0 0.0
    %827 = vmatprep.subr.mxu0 0.0
    %828 = vmatpush1.msra.mxu0 0.0
    %829 = vmatprep.subr.mxu0 0.0
    %830 = vmatpush1.msra.mxu0 0.0
    %831 = vmatprep.subr.mxu0 0.0
    %832 = vmatpush1.msra.mxu0 0.0
    %833 = vmatprep.subr.mxu0 0.0
    %834 = vmatpush1.msra.mxu0 0.0
    %835 = vmatprep.subr.mxu0 0.0
    %836 = vmatpush1.msra.mxu0 0.0
    %837 = vmatprep.subr.mxu0 0.0
    %838 = vmatpush1.msra.mxu0 0.0
    %839 = vmatprep.subr.mxu0 0.0
    %840 = vmatpush1.msra.mxu0 %v393
    %841 = vmatprep.subr.mxu0 0.0
    %842 = vmatpush1.msra.mxu0 %v392
    %843 = vmatprep.subr.mxu0 0.0
    %844 = vmatpush1.msra.mxu0 %v391
    %845 = vmatprep.subr.mxu0 0.0
    %846 = vmatpush1.msra.mxu0 %v390
    %847 = vmatprep.subr.mxu0 0.0
    %848 = vmatpush2.msra.mxu0 0.0
    %849 = vmatprep.subr.mxu0 0.0
    %850 = vmatpush2.msra.mxu0 0.0
    %851 = vmatprep.subr.mxu0 0.0
    %852 = vmatpush2.msra.mxu0 0.0
    %853 = vmatprep.subr.mxu0 0.0
    %854 = vmatpush2.msra.mxu0 0.0
    %855 = vmatprep.subr.mxu0 0.0
    %856 = vmatpush2.msra.mxu0 0.0
    %857 = vmatprep.subr.mxu0 0.0
    %858 = vmatpush2.msra.mxu0 0.0
    %859 = vmatprep.subr.mxu0 0.0
    %860 = vmatpush2.msra.mxu0 0.0
    %861 = vmatprep.subr.mxu0 0.0
    %862 = vmatpush2.msra.mxu0 0.0
    %863 = vmatprep.subr.mxu0 0.0
    %864 = vmatpush2.msra.mxu0 0.0
    %865 = vmatprep.subr.mxu0 0.0
    %866 = vmatpush2.msra.mxu0 0.0
    %867 = vmatprep.subr.mxu0 0.0
    %868 = vmatpush2.msra.mxu0 0.0
    %869 = vmatprep.subr.mxu0 0.0
    %870 = vmatpush2.msra.mxu0 0.0
    %871 = vmatprep.subr.mxu0 0.0
    %872 = vmatpush2.msra.mxu0 0.0
    %873 = vmatprep.subr.mxu0 0.0
    %874 = vmatpush2.msra.mxu0 0.0
    %875 = vmatprep.subr.mxu0 0.0
    %876 = vmatpush2.msra.mxu0 0.0
    %877 = vmatprep.subr.mxu0 0.0
    %878 = vmatpush2.msra.mxu0 0.0
    %879 = vmatprep.mubr.f32.mxu0 0.0
    %880 = vmatmul.mubr.f32.gmra.mxu0 %v813
    %v881 = vpop.f32.mrf.mxu0
    %v882 = vadd.f32 %v399, %v881
    %v883 = vpop.f32.mrf.mxu0
    %884 = vdwg.mxu0
    %v885 = vadd.f32 %v809, %v882
    %v886 = vxor.u32 %v885, 2147483648
    %v887 = vmul.f32 %v886, 1.442695
    %v888 = vpow.pop %v887
    %v889 = vadd.f32 %v888, 1.0
    %v890 = vrcp.pop %v889
    %v891 = vmul.f32 1.0, %v890
    %893 = vrot.lane.b32.xlu0 %v882, 64
    %v894 = vpop.permute.xlu0 %893
    %v896 = vmul.f32 %v891, %v894
    %898 = vrot.lane.b32.xlu0 %v896, 64
    %v899 = vpop.permute.xlu0 %898
    %v901 = vadd.f32 %v809, %v899
    %v902 = vtanh.pop %v901
    %v903 = vsub.f32 1.0, %v891
    %905 = vrot.lane.b32.xlu0 %v902, 96
    %v906 = vpop.permute.xlu0 %905
    %v908 = vmul.f32 %v903, %v906
    %v909 = vmul.f32 %v891, %v807
    %v910 = vadd.f32 %v908, %v909
    %s911 = scalar_lea.vmem [#allocation2], 10
    %v912 = vld [vmem:[%s911] sm:$0x3]
    %914 = vrot.lane.b32.xlu0 %v910, 96
    %v915 = vpop.permute.xlu0 %914
    %v916 = vsel %vm32, %v915, 0
    %918 = vmatprep.subr.mxu0 0.0
    %919 = vmatpush1.msra.mxu0 0.0
    %920 = vmatprep.subr.mxu0 0.0
    %921 = vmatpush1.msra.mxu0 0.0
    %922 = vmatprep.subr.mxu0 0.0
    %923 = vmatpush1.msra.mxu0 0.0
    %924 = vmatprep.subr.mxu0 0.0
    %925 = vmatpush1.msra.mxu0 0.0
    %926 = vmatprep.subr.mxu0 0.0
    %927 = vmatpush1.msra.mxu0 0.0
    %928 = vmatprep.subr.mxu0 0.0
    %929 = vmatpush1.msra.mxu0 0.0
    %930 = vmatprep.subr.mxu0 0.0
    %931 = vmatpush1.msra.mxu0 0.0
    %932 = vmatprep.subr.mxu0 0.0
    %933 = vmatpush1.msra.mxu0 0.0
    %934 = vmatprep.subr.mxu0 0.0
    %935 = vmatpush1.msra.mxu0 0.0
    %936 = vmatprep.subr.mxu0 0.0
    %937 = vmatpush1.msra.mxu0 0.0
    %938 = vmatprep.subr.mxu0 0.0
    %939 = vmatpush1.msra.mxu0 0.0
    %940 = vmatprep.subr.mxu0 0.0
    %941 = vmatpush1.msra.mxu0 0.0
    %942 = vmatprep.subr.mxu0 0.0
    %943 = vmatpush1.msra.mxu0 %v393
    %944 = vmatprep.subr.mxu0 0.0
    %945 = vmatpush1.msra.mxu0 %v392
    %946 = vmatprep.subr.mxu0 0.0
    %947 = vmatpush1.msra.mxu0 %v391
    %948 = vmatprep.subr.mxu0 0.0
    %949 = vmatpush1.msra.mxu0 %v390
    %950 = vmatprep.subr.mxu0 0.0
    %951 = vmatpush2.msra.mxu0 0.0
    %952 = vmatprep.subr.mxu0 0.0
    %953 = vmatpush2.msra.mxu0 0.0
    %954 = vmatprep.subr.mxu0 0.0
    %955 = vmatpush2.msra.mxu0 0.0
    %956 = vmatprep.subr.mxu0 0.0
    %957 = vmatpush2.msra.mxu0 0.0
    %958 = vmatprep.subr.mxu0 0.0
    %959 = vmatpush2.msra.mxu0 0.0
    %960 = vmatprep.subr.mxu0 0.0
    %961 = vmatpush2.msra.mxu0 0.0
    %962 = vmatprep.subr.mxu0 0.0
    %963 = vmatpush2.msra.mxu0 0.0
    %964 = vmatprep.subr.mxu0 0.0
    %965 = vmatpush2.msra.mxu0 0.0
    %966 = vmatprep.subr.mxu0 0.0
    %967 = vmatpush2.msra.mxu0 0.0
    %968 = vmatprep.subr.mxu0 0.0
    %969 = vmatpush2.msra.mxu0 0.0
    %970 = vmatprep.subr.mxu0 0.0
    %971 = vmatpush2.msra.mxu0 0.0
    %972 = vmatprep.subr.mxu0 0.0
    %973 = vmatpush2.msra.mxu0 0.0
    %974 = vmatprep.subr.mxu0 0.0
    %975 = vmatpush2.msra.mxu0 0.0
    %976 = vmatprep.subr.mxu0 0.0
    %977 = vmatpush2.msra.mxu0 0.0
    %978 = vmatprep.subr.mxu0 0.0
    %979 = vmatpush2.msra.mxu0 0.0
    %980 = vmatprep.subr.mxu0 0.0
    %981 = vmatpush2.msra.mxu0 0.0
    %982 = vmatprep.mubr.f32.mxu0 0.0
    %983 = vmatmul.mubr.f32.gmra.mxu0 %v916
    %v984 = vpop.f32.mrf.mxu0
    %v985 = vadd.f32 %v399, %v984
    %v986 = vpop.f32.mrf.mxu0
    %987 = vdwg.mxu0
    %v988 = vadd.f32 %v912, %v985
    %v989 = vxor.u32 %v988, 2147483648
    %v990 = vmul.f32 %v989, 1.442695
    %v991 = vpow.pop %v990
    %v992 = vadd.f32 %v991, 1.0
    %v993 = vrcp.pop %v992
    %v994 = vmul.f32 1.0, %v993
    %996 = vrot.lane.b32.xlu0 %v985, 64
    %v997 = vpop.permute.xlu0 %996
    %v999 = vmul.f32 %v994, %v997
    %1001 = vrot.lane.b32.xlu0 %v999, 64
    %v1002 = vpop.permute.xlu0 %1001
    %v1004 = vadd.f32 %v912, %v1002
    %v1005 = vtanh.pop %v1004
    %v1006 = vsub.f32 1.0, %v994
    %1008 = vrot.lane.b32.xlu0 %v1005, 96
    %v1009 = vpop.permute.xlu0 %1008
    %v1011 = vmul.f32 %v1006, %v1009
    %v1012 = vmul.f32 %v994, %v910
    %v1013 = vadd.f32 %v1011, %v1012
    %s1014 = scalar_lea.vmem [#allocation2], 12
    %v1015 = vld [vmem:[%s1014] sm:$0x3]
    %1017 = vrot.lane.b32.xlu0 %v1013, 96
    %v1018 = vpop.permute.xlu0 %1017
    %v1019 = vsel %vm32, %v1018, 0
    %1021 = vmatprep.subr.mxu0 0.0
    %1022 = vmatpush1.msra.mxu0 0.0
    %1023 = vmatprep.subr.mxu0 0.0
    %1024 = vmatpush1.msra.mxu0 0.0
    %1025 = vmatprep.subr.mxu0 0.0
    %1026 = vmatpush1.msra.mxu0 0.0
    %1027 = vmatprep.subr.mxu0 0.0
    %1028 = vmatpush1.msra.mxu0 0.0
    %1029 = vmatprep.subr.mxu0 0.0
    %1030 = vmatpush1.msra.mxu0 0.0
    %1031 = vmatprep.subr.mxu0 0.0
    %1032 = vmatpush1.msra.mxu0 0.0
    %1033 = vmatprep.subr.mxu0 0.0
    %1034 = vmatpush1.msra.mxu0 0.0
    %1035 = vmatprep.subr.mxu0 0.0
    %1036 = vmatpush1.msra.mxu0 0.0
    %1037 = vmatprep.subr.mxu0 0.0
    %1038 = vmatpush1.msra.mxu0 0.0
    %1039 = vmatprep.subr.mxu0 0.0
    %1040 = vmatpush1.msra.mxu0 0.0
    %1041 = vmatprep.subr.mxu0 0.0
    %1042 = vmatpush1.msra.mxu0 0.0
    %1043 = vmatprep.subr.mxu0 0.0
    %1044 = vmatpush1.msra.mxu0 0.0
    %1045 = vmatprep.subr.mxu0 0.0
    %1046 = vmatpush1.msra.mxu0 %v393
    %1047 = vmatprep.subr.mxu0 0.0
    %1048 = vmatpush1.msra.mxu0 %v392
    %1049 = vmatprep.subr.mxu0 0.0
    %1050 = vmatpush1.msra.mxu0 %v391
    %1051 = vmatprep.subr.mxu0 0.0
    %1052 = vmatpush1.msra.mxu0 %v390
    %1053 = vmatprep.subr.mxu0 0.0
    %1054 = vmatpush2.msra.mxu0 0.0
    %1055 = vmatprep.subr.mxu0 0.0
    %1056 = vmatpush2.msra.mxu0 0.0
    %1057 = vmatprep.subr.mxu0 0.0
    %1058 = vmatpush2.msra.mxu0 0.0
    %1059 = vmatprep.subr.mxu0 0.0
    %1060 = vmatpush2.msra.mxu0 0.0
    %1061 = vmatprep.subr.mxu0 0.0
    %1062 = vmatpush2.msra.mxu0 0.0
    %1063 = vmatprep.subr.mxu0 0.0
    %1064 = vmatpush2.msra.mxu0 0.0
    %1065 = vmatprep.subr.mxu0 0.0
    %1066 = vmatpush2.msra.mxu0 0.0
    %1067 = vmatprep.subr.mxu0 0.0
    %1068 = vmatpush2.msra.mxu0 0.0
    %1069 = vmatprep.subr.mxu0 0.0
    %1070 = vmatpush2.msra.mxu0 0.0
    %1071 = vmatprep.subr.mxu0 0.0
    %1072 = vmatpush2.msra.mxu0 0.0
    %1073 = vmatprep.subr.mxu0 0.0
    %1074 = vmatpush2.msra.mxu0 0.0
    %1075 = vmatprep.subr.mxu0 0.0
    %1076 = vmatpush2.msra.mxu0 0.0
    %1077 = vmatprep.subr.mxu0 0.0
    %1078 = vmatpush2.msra.mxu0 0.0
    %1079 = vmatprep.subr.mxu0 0.0
    %1080 = vmatpush2.msra.mxu0 0.0
    %1081 = vmatprep.subr.mxu0 0.0
    %1082 = vmatpush2.msra.mxu0 0.0
    %1083 = vmatprep.subr.mxu0 0.0
    %1084 = vmatpush2.msra.mxu0 0.0
    %1085 = vmatprep.mubr.f32.mxu0 0.0
    %1086 = vmatmul.mubr.f32.gmra.mxu0 %v1019
    %v1087 = vpop.f32.mrf.mxu0
    %v1088 = vadd.f32 %v399, %v1087
    %v1089 = vpop.f32.mrf.mxu0
    %1090 = vdwg.mxu0
    %v1091 = vadd.f32 %v1015, %v1088
    %v1092 = vxor.u32 %v1091, 2147483648
    %v1093 = vmul.f32 %v1092, 1.442695
    %v1094 = vpow.pop %v1093
    %v1095 = vadd.f32 %v1094, 1.0
    %v1096 = vrcp.pop %v1095
    %v1097 = vmul.f32 1.0, %v1096
    %1099 = vrot.lane.b32.xlu0 %v1088, 64
    %v1100 = vpop.permute.xlu0 %1099
    %v1102 = vmul.f32 %v1097, %v1100
    %1104 = vrot.lane.b32.xlu0 %v1102, 64
    %v1105 = vpop.permute.xlu0 %1104
    %v1107 = vadd.f32 %v1015, %v1105
    %v1108 = vtanh.pop %v1107
    %v1109 = vsub.f32 1.0, %v1097
    %1111 = vrot.lane.b32.xlu0 %v1108, 96
    %v1112 = vpop.permute.xlu0 %1111
    %v1114 = vmul.f32 %v1109, %v1112
    %v1115 = vmul.f32 %v1097, %v1013
    %v1116 = vadd.f32 %v1114, %v1115
    %s1117 = scalar_lea.vmem [#allocation2], 14
    %v1118 = vld [vmem:[%s1117] sm:$0x3]
    %1120 = vrot.lane.b32.xlu0 %v1116, 96
    %v1121 = vpop.permute.xlu0 %1120
    %v1122 = vsel %vm32, %v1121, 0
    %1124 = vmatprep.subr.mxu0 0.0
    %1125 = vmatpush1.msra.mxu0 0.0
    %1126 = vmatprep.subr.mxu0 0.0
    %1127 = vmatpush1.msra.mxu0 0.0
    %1128 = vmatprep.subr.mxu0 0.0
    %1129 = vmatpush1.msra.mxu0 0.0
    %1130 = vmatprep.subr.mxu0 0.0
    %1131 = vmatpush1.msra.mxu0 0.0
    %1132 = vmatprep.subr.mxu0 0.0
    %1133 = vmatpush1.msra.mxu0 0.0
    %1134 = vmatprep.subr.mxu0 0.0
    %1135 = vmatpush1.msra.mxu0 0.0
    %1136 = vmatprep.subr.mxu0 0.0
    %1137 = vmatpush1.msra.mxu0 0.0
    %1138 = vmatprep.subr.mxu0 0.0
    %1139 = vmatpush1.msra.mxu0 0.0
    %1140 = vmatprep.subr.mxu0 0.0
    %1141 = vmatpush1.msra.mxu0 0.0
    %1142 = vmatprep.subr.mxu0 0.0
    %1143 = vmatpush1.msra.mxu0 0.0
    %1144 = vmatprep.subr.mxu0 0.0
    %1145 = vmatpush1.msra.mxu0 0.0
    %1146 = vmatprep.subr.mxu0 0.0
    %1147 = vmatpush1.msra.mxu0 0.0
    %1148 = vmatprep.subr.mxu0 0.0
    %1149 = vmatpush1.msra.mxu0 %v393
    %1150 = vmatprep.subr.mxu0 0.0
    %1151 = vmatpush1.msra.mxu0 %v392
    %1152 = vmatprep.subr.mxu0 0.0
    %1153 = vmatpush1.msra.mxu0 %v391
    %1154 = vmatprep.subr.mxu0 0.0
    %1155 = vmatpush1.msra.mxu0 %v390
    %1156 = vmatprep.subr.mxu0 0.0
    %1157 = vmatpush2.msra.mxu0 0.0
    %1158 = vmatprep.subr.mxu0 0.0
    %1159 = vmatpush2.msra.mxu0 0.0
    %1160 = vmatprep.subr.mxu0 0.0
    %1161 = vmatpush2.msra.mxu0 0.0
    %1162 = vmatprep.subr.mxu0 0.0
    %1163 = vmatpush2.msra.mxu0 0.0
    %1164 = vmatprep.subr.mxu0 0.0
    %1165 = vmatpush2.msra.mxu0 0.0
    %1166 = vmatprep.subr.mxu0 0.0
    %1167 = vmatpush2.msra.mxu0 0.0
    %1168 = vmatprep.subr.mxu0 0.0
    %1169 = vmatpush2.msra.mxu0 0.0
    %1170 = vmatprep.subr.mxu0 0.0
    %1171 = vmatpush2.msra.mxu0 0.0
    %1172 = vmatprep.subr.mxu0 0.0
    %1173 = vmatpush2.msra.mxu0 0.0
    %1174 = vmatprep.subr.mxu0 0.0
    %1175 = vmatpush2.msra.mxu0 0.0
    %1176 = vmatprep.subr.mxu0 0.0
    %1177 = vmatpush2.msra.mxu0 0.0
    %1178 = vmatprep.subr.mxu0 0.0
    %1179 = vmatpush2.msra.mxu0 0.0
    %1180 = vmatprep.subr.mxu0 0.0
    %1181 = vmatpush2.msra.mxu0 0.0
    %1182 = vmatprep.subr.mxu0 0.0
    %1183 = vmatpush2.msra.mxu0 0.0
    %1184 = vmatprep.subr.mxu0 0.0
    %1185 = vmatpush2.msra.mxu0 0.0
    %1186 = vmatprep.subr.mxu0 0.0
    %1187 = vmatpush2.msra.mxu0 0.0
    %1188 = vmatprep.mubr.f32.mxu0 0.0
    %1189 = vmatmul.mubr.f32.gmra.mxu0 %v1122
    %v1190 = vpop.f32.mrf.mxu0
    %v1191 = vadd.f32 %v399, %v1190
    %v1192 = vpop.f32.mrf.mxu0
    %1193 = vdwg.mxu0
    %v1194 = vadd.f32 %v1118, %v1191
    %v1195 = vxor.u32 %v1194, 2147483648
    %v1196 = vmul.f32 %v1195, 1.442695
    %v1197 = vpow.pop %v1196
    %v1198 = vadd.f32 %v1197, 1.0
    %v1199 = vrcp.pop %v1198
    %v1200 = vmul.f32 1.0, %v1199
    %1202 = vrot.lane.b32.xlu0 %v1191, 64
    %v1203 = vpop.permute.xlu0 %1202
    %v1205 = vmul.f32 %v1200, %v1203
    %1207 = vrot.lane.b32.xlu0 %v1205, 64
    %v1208 = vpop.permute.xlu0 %1207
    %v1210 = vadd.f32 %v1118, %v1208
    %v1211 = vtanh.pop %v1210
    %v1212 = vsub.f32 1.0, %v1200
    %1214 = vrot.lane.b32.xlu0 %v1211, 96
    %v1215 = vpop.permute.xlu0 %1214
    %v1217 = vmul.f32 %v1212, %v1215
    %v1218 = vmul.f32 %v1200, %v1116
    %v1219 = vadd.f32 %v1217, %v1218
    %s1220 = scalar_lea.vmem [#allocation2], 16
    %v1221 = vld [vmem:[%s1220] sm:$0x3]
    %1223 = vrot.lane.b32.xlu0 %v1219, 96
    %v1224 = vpop.permute.xlu0 %1223
    %v1225 = vsel %vm32, %v1224, 0
    %1227 = vmatprep.subr.mxu0 0.0
    %1228 = vmatpush1.msra.mxu0 0.0
    %1229 = vmatprep.subr.mxu0 0.0
    %1230 = vmatpush1.msra.mxu0 0.0
    %1231 = vmatprep.subr.mxu0 0.0
    %1232 = vmatpush1.msra.mxu0 0.0
    %1233 = vmatprep.subr.mxu0 0.0
    %1234 = vmatpush1.msra.mxu0 0.0
    %1235 = vmatprep.subr.mxu0 0.0
    %1236 = vmatpush1.msra.mxu0 0.0
    %1237 = vmatprep.subr.mxu0 0.0
    %1238 = vmatpush1.msra.mxu0 0.0
    %1239 = vmatprep.subr.mxu0 0.0
    %1240 = vmatpush1.msra.mxu0 0.0
    %1241 = vmatprep.subr.mxu0 0.0
    %1242 = vmatpush1.msra.mxu0 0.0
    %1243 = vmatprep.subr.mxu0 0.0
    %1244 = vmatpush1.msra.mxu0 0.0
    %1245 = vmatprep.subr.mxu0 0.0
    %1246 = vmatpush1.msra.mxu0 0.0
    %1247 = vmatprep.subr.mxu0 0.0
    %1248 = vmatpush1.msra.mxu0 0.0
    %1249 = vmatprep.subr.mxu0 0.0
    %1250 = vmatpush1.msra.mxu0 0.0
    %1251 = vmatprep.subr.mxu0 0.0
    %1252 = vmatpush1.msra.mxu0 %v393
    %1253 = vmatprep.subr.mxu0 0.0
    %1254 = vmatpush1.msra.mxu0 %v392
    %1255 = vmatprep.subr.mxu0 0.0
    %1256 = vmatpush1.msra.mxu0 %v391
    %1257 = vmatprep.subr.mxu0 0.0
    %1258 = vmatpush1.msra.mxu0 %v390
    %1259 = vmatprep.subr.mxu0 0.0
    %1260 = vmatpush2.msra.mxu0 0.0
    %1261 = vmatprep.subr.mxu0 0.0
    %1262 = vmatpush2.msra.mxu0 0.0
    %1263 = vmatprep.subr.mxu0 0.0
    %1264 = vmatpush2.msra.mxu0 0.0
    %1265 = vmatprep.subr.mxu0 0.0
    %1266 = vmatpush2.msra.mxu0 0.0
    %1267 = vmatprep.subr.mxu0 0.0
    %1268 = vmatpush2.msra.mxu0 0.0
    %1269 = vmatprep.subr.mxu0 0.0
    %1270 = vmatpush2.msra.mxu0 0.0
    %1271 = vmatprep.subr.mxu0 0.0
    %1272 = vmatpush2.msra.mxu0 0.0
    %1273 = vmatprep.subr.mxu0 0.0
    %1274 = vmatpush2.msra.mxu0 0.0
    %1275 = vmatprep.subr.mxu0 0.0
    %1276 = vmatpush2.msra.mxu0 0.0
    %1277 = vmatprep.subr.mxu0 0.0
    %1278 = vmatpush2.msra.mxu0 0.0
    %1279 = vmatprep.subr.mxu0 0.0
    %1280 = vmatpush2.msra.mxu0 0.0
    %1281 = vmatprep.subr.mxu0 0.0
    %1282 = vmatpush2.msra.mxu0 0.0
    %1283 = vmatprep.subr.mxu0 0.0
    %1284 = vmatpush2.msra.mxu0 0.0
    %1285 = vmatprep.subr.mxu0 0.0
    %1286 = vmatpush2.msra.mxu0 0.0
    %1287 = vmatprep.subr.mxu0 0.0
    %1288 = vmatpush2.msra.mxu0 0.0
    %1289 = vmatprep.subr.mxu0 0.0
    %1290 = vmatpush2.msra.mxu0 0.0
    %1291 = vmatprep.mubr.f32.mxu0 0.0
    %1292 = vmatmul.mubr.f32.gmra.mxu0 %v1225
    %v1293 = vpop.f32.mrf.mxu0
    %v1294 = vadd.f32 %v399, %v1293
    %v1295 = vpop.f32.mrf.mxu0
    %1296 = vdwg.mxu0
    %v1297 = vadd.f32 %v1221, %v1294
    %v1298 = vxor.u32 %v1297, 2147483648
    %v1299 = vmul.f32 %v1298, 1.442695
    %v1300 = vpow.pop %v1299
    %v1301 = vadd.f32 %v1300, 1.0
    %v1302 = vrcp.pop %v1301
    %v1303 = vmul.f32 1.0, %v1302
    %1305 = vrot.lane.b32.xlu0 %v1294, 64
    %v1306 = vpop.permute.xlu0 %1305
    %v1308 = vmul.f32 %v1303, %v1306
    %1310 = vrot.lane.b32.xlu0 %v1308, 64
    %v1311 = vpop.permute.xlu0 %1310
    %v1313 = vadd.f32 %v1221, %v1311
    %v1314 = vtanh.pop %v1313
    %v1315 = vsub.f32 1.0, %v1303
    %1317 = vrot.lane.b32.xlu0 %v1314, 96
    %v1318 = vpop.permute.xlu0 %1317
    %v1320 = vmul.f32 %v1315, %v1318
    %v1321 = vmul.f32 %v1303, %v1219
    %v1322 = vadd.f32 %v1320, %v1321
    %s1323 = scalar_lea.vmem [#allocation2], 18
    %v1324 = vld [vmem:[%s1323] sm:$0x3]
    %1326 = vrot.lane.b32.xlu0 %v1322, 96
    %v1327 = vpop.permute.xlu0 %1326
    %v1328 = vsel %vm32, %v1327, 0
    %1330 = vmatprep.subr.mxu0 0.0
    %1331 = vmatpush1.msra.mxu0 0.0
    %1332 = vmatprep.subr.mxu0 0.0
    %1333 = vmatpush1.msra.mxu0 0.0
    %1334 = vmatprep.subr.mxu0 0.0
    %1335 = vmatpush1.msra.mxu0 0.0
    %1336 = vmatprep.subr.mxu0 0.0
    %1337 = vmatpush1.msra.mxu0 0.0
    %1338 = vmatprep.subr.mxu0 0.0
    %1339 = vmatpush1.msra.mxu0 0.0
    %1340 = vmatprep.subr.mxu0 0.0
    %1341 = vmatpush1.msra.mxu0 0.0
    %1342 = vmatprep.subr.mxu0 0.0
    %1343 = vmatpush1.msra.mxu0 0.0
    %1344 = vmatprep.subr.mxu0 0.0
    %1345 = vmatpush1.msra.mxu0 0.0
    %1346 = vmatprep.subr.mxu0 0.0
    %1347 = vmatpush1.msra.mxu0 0.0
    %1348 = vmatprep.subr.mxu0 0.0
    %1349 = vmatpush1.msra.mxu0 0.0
    %1350 = vmatprep.subr.mxu0 0.0
    %1351 = vmatpush1.msra.mxu0 0.0
    %1352 = vmatprep.subr.mxu0 0.0
    %1353 = vmatpush1.msra.mxu0 0.0
    %1354 = vmatprep.subr.mxu0 0.0
    %1355 = vmatpush1.msra.mxu0 %v393
    %1356 = vmatprep.subr.mxu0 0.0
    %1357 = vmatpush1.msra.mxu0 %v392
    %1358 = vmatprep.subr.mxu0 0.0
    %1359 = vmatpush1.msra.mxu0 %v391
    %1360 = vmatprep.subr.mxu0 0.0
    %1361 = vmatpush1.msra.mxu0 %v390
    %1362 = vmatprep.subr.mxu0 0.0
    %1363 = vmatpush2.msra.mxu0 0.0
    %1364 = vmatprep.subr.mxu0 0.0
    %1365 = vmatpush2.msra.mxu0 0.0
    %1366 = vmatprep.subr.mxu0 0.0
    %1367 = vmatpush2.msra.mxu0 0.0
    %1368 = vmatprep.subr.mxu0 0.0
    %1369 = vmatpush2.msra.mxu0 0.0
    %1370 = vmatprep.subr.mxu0 0.0
    %1371 = vmatpush2.msra.mxu0 0.0
    %1372 = vmatprep.subr.mxu0 0.0
    %1373 = vmatpush2.msra.mxu0 0.0
    %1374 = vmatprep.subr.mxu0 0.0
    %1375 = vmatpush2.msra.mxu0 0.0
    %1376 = vmatprep.subr.mxu0 0.0
    %1377 = vmatpush2.msra.mxu0 0.0
    %1378 = vmatprep.subr.mxu0 0.0
    %1379 = vmatpush2.msra.mxu0 0.0
    %1380 = vmatprep.subr.mxu0 0.0
    %1381 = vmatpush2.msra.mxu0 0.0
    %1382 = vmatprep.subr.mxu0 0.0
    %1383 = vmatpush2.msra.mxu0 0.0
    %1384 = vmatprep.subr.mxu0 0.0
    %1385 = vmatpush2.msra.mxu0 0.0
    %1386 = vmatprep.subr.mxu0 0.0
    %1387 = vmatpush2.msra.mxu0 0.0
    %1388 = vmatprep.subr.mxu0 0.0
    %1389 = vmatpush2.msra.mxu0 0.0
    %1390 = vmatprep.subr.mxu0 0.0
    %1391 = vmatpush2.msra.mxu0 0.0
    %1392 = vmatprep.subr.mxu0 0.0
    %1393 = vmatpush2.msra.mxu0 0.0
    %1394 = vmatprep.mubr.f32.mxu0 0.0
    %1395 = vmatmul.mubr.f32.gmra.mxu0 %v1328
    %v1396 = vpop.f32.mrf.mxu0
    %v1397 = vadd.f32 %v399, %v1396
    %v1398 = vpop.f32.mrf.mxu0
    %1399 = vdwg.mxu0
    %v1400 = vadd.f32 %v1324, %v1397
    %v1401 = vxor.u32 %v1400, 2147483648
    %v1402 = vmul.f32 %v1401, 1.442695
    %v1403 = vpow.pop %v1402
    %v1404 = vadd.f32 %v1403, 1.0
    %v1405 = vrcp.pop %v1404
    %v1406 = vmul.f32 1.0, %v1405
    %1408 = vrot.lane.b32.xlu0 %v1397, 64
    %v1409 = vpop.permute.xlu0 %1408
    %v1411 = vmul.f32 %v1406, %v1409
    %1413 = vrot.lane.b32.xlu0 %v1411, 64
    %v1414 = vpop.permute.xlu0 %1413
    %v1416 = vadd.f32 %v1324, %v1414
    %v1417 = vtanh.pop %v1416
    %v1418 = vsub.f32 1.0, %v1406
    %1420 = vrot.lane.b32.xlu0 %v1417, 96
    %v1421 = vpop.permute.xlu0 %1420
    %v1423 = vmul.f32 %v1418, %v1421
    %v1424 = vmul.f32 %v1406, %v1322
    %v1425 = vadd.f32 %v1423, %v1424
    %s1426 = scalar_lea.vmem [#allocation2], 20
    %v1427 = vld [vmem:[%s1426] sm:$0x3]
    %1429 = vrot.lane.b32.xlu0 %v1425, 96
    %v1430 = vpop.permute.xlu0 %1429
    %v1431 = vsel %vm32, %v1430, 0
    %1433 = vmatprep.subr.mxu0 0.0
    %1434 = vmatpush1.msra.mxu0 0.0
    %1435 = vmatprep.subr.mxu0 0.0
    %1436 = vmatpush1.msra.mxu0 0.0
    %1437 = vmatprep.subr.mxu0 0.0
    %1438 = vmatpush1.msra.mxu0 0.0
    %1439 = vmatprep.subr.mxu0 0.0
    %1440 = vmatpush1.msra.mxu0 0.0
    %1441 = vmatprep.subr.mxu0 0.0
    %1442 = vmatpush1.msra.mxu0 0.0
    %1443 = vmatprep.subr.mxu0 0.0
    %1444 = vmatpush1.msra.mxu0 0.0
    %1445 = vmatprep.subr.mxu0 0.0
    %1446 = vmatpush1.msra.mxu0 0.0
    %1447 = vmatprep.subr.mxu0 0.0
    %1448 = vmatpush1.msra.mxu0 0.0
    %1449 = vmatprep.subr.mxu0 0.0
    %1450 = vmatpush1.msra.mxu0 0.0
    %1451 = vmatprep.subr.mxu0 0.0
    %1452 = vmatpush1.msra.mxu0 0.0
    %1453 = vmatprep.subr.mxu0 0.0
    %1454 = vmatpush1.msra.mxu0 0.0
    %1455 = vmatprep.subr.mxu0 0.0
    %1456 = vmatpush1.msra.mxu0 0.0
    %1457 = vmatprep.subr.mxu0 0.0
    %1458 = vmatpush1.msra.mxu0 %v393
    %1459 = vmatprep.subr.mxu0 0.0
    %1460 = vmatpush1.msra.mxu0 %v392
    %1461 = vmatprep.subr.mxu0 0.0
    %1462 = vmatpush1.msra.mxu0 %v391
    %1463 = vmatprep.subr.mxu0 0.0
    %1464 = vmatpush1.msra.mxu0 %v390
    %1465 = vmatprep.subr.mxu0 0.0
    %1466 = vmatpush2.msra.mxu0 0.0
    %1467 = vmatprep.subr.mxu0 0.0
    %1468 = vmatpush2.msra.mxu0 0.0
    %1469 = vmatprep.subr.mxu0 0.0
    %1470 = vmatpush2.msra.mxu0 0.0
    %1471 = vmatprep.subr.mxu0 0.0
    %1472 = vmatpush2.msra.mxu0 0.0
    %1473 = vmatprep.subr.mxu0 0.0
    %1474 = vmatpush2.msra.mxu0 0.0
    %1475 = vmatprep.subr.mxu0 0.0
    %1476 = vmatpush2.msra.mxu0 0.0
    %1477 = vmatprep.subr.mxu0 0.0
    %1478 = vmatpush2.msra.mxu0 0.0
    %1479 = vmatprep.subr.mxu0 0.0
    %1480 = vmatpush2.msra.mxu0 0.0
    %1481 = vmatprep.subr.mxu0 0.0
    %1482 = vmatpush2.msra.mxu0 0.0
    %1483 = vmatprep.subr.mxu0 0.0
    %1484 = vmatpush2.msra.mxu0 0.0
    %1485 = vmatprep.subr.mxu0 0.0
    %1486 = vmatpush2.msra.mxu0 0.0
    %1487 = vmatprep.subr.mxu0 0.0
    %1488 = vmatpush2.msra.mxu0 0.0
    %1489 = vmatprep.subr.mxu0 0.0
    %1490 = vmatpush2.msra.mxu0 0.0
    %1491 = vmatprep.subr.mxu0 0.0
    %1492 = vmatpush2.msra.mxu0 0.0
    %1493 = vmatprep.subr.mxu0 0.0
    %1494 = vmatpush2.msra.mxu0 0.0
    %1495 = vmatprep.subr.mxu0 0.0
    %1496 = vmatpush2.msra.mxu0 0.0
    %1497 = vmatprep.mubr.f32.mxu0 0.0
    %1498 = vmatmul.mubr.f32.gmra.mxu0 %v1431
    %v1499 = vpop.f32.mrf.mxu0
    %v1500 = vadd.f32 %v399, %v1499
    %v1501 = vpop.f32.mrf.mxu0
    %1502 = vdwg.mxu0
    %v1503 = vadd.f32 %v1427, %v1500
    %v1504 = vxor.u32 %v1503, 2147483648
    %v1505 = vmul.f32 %v1504, 1.442695
    %v1506 = vpow.pop %v1505
    %v1507 = vadd.f32 %v1506, 1.0
    %v1508 = vrcp.pop %v1507
    %v1509 = vmul.f32 1.0, %v1508
    %1511 = vrot.lane.b32.xlu0 %v1500, 64
    %v1512 = vpop.permute.xlu0 %1511
    %v1514 = vmul.f32 %v1509, %v1512
    %1516 = vrot.lane.b32.xlu0 %v1514, 64
    %v1517 = vpop.permute.xlu0 %1516
    %v1519 = vadd.f32 %v1427, %v1517
    %v1520 = vtanh.pop %v1519
    %v1521 = vsub.f32 1.0, %v1509
    %1523 = vrot.lane.b32.xlu0 %v1520, 96
    %v1524 = vpop.permute.xlu0 %1523
    %v1526 = vmul.f32 %v1521, %v1524
    %v1527 = vmul.f32 %v1509, %v1425
    %v1528 = vadd.f32 %v1526, %v1527
    %s1529 = scalar_lea.vmem [#allocation2], 22
    %v1530 = vld [vmem:[%s1529] sm:$0x3]
    %1532 = vrot.lane.b32.xlu0 %v1528, 96
    %v1533 = vpop.permute.xlu0 %1532
    %v1534 = vsel %vm32, %v1533, 0
    %1536 = vmatprep.subr.mxu0 0.0
    %1537 = vmatpush1.msra.mxu0 0.0
    %1538 = vmatprep.subr.mxu0 0.0
    %1539 = vmatpush1.msra.mxu0 0.0
    %1540 = vmatprep.subr.mxu0 0.0
    %1541 = vmatpush1.msra.mxu0 0.0
    %1542 = vmatprep.subr.mxu0 0.0
    %1543 = vmatpush1.msra.mxu0 0.0
    %1544 = vmatprep.subr.mxu0 0.0
    %1545 = vmatpush1.msra.mxu0 0.0
    %1546 = vmatprep.subr.mxu0 0.0
    %1547 = vmatpush1.msra.mxu0 0.0
    %1548 = vmatprep.subr.mxu0 0.0
    %1549 = vmatpush1.msra.mxu0 0.0
    %1550 = vmatprep.subr.mxu0 0.0
    %1551 = vmatpush1.msra.mxu0 0.0
    %1552 = vmatprep.subr.mxu0 0.0
    %1553 = vmatpush1.msra.mxu0 0.0
    %1554 = vmatprep.subr.mxu0 0.0
    %1555 = vmatpush1.msra.mxu0 0.0
    %1556 = vmatprep.subr.mxu0 0.0
    %1557 = vmatpush1.msra.mxu0 0.0
    %1558 = vmatprep.subr.mxu0 0.0
    %1559 = vmatpush1.msra.mxu0 0.0
    %1560 = vmatprep.subr.mxu0 0.0
    %1561 = vmatpush1.msra.mxu0 %v393
    %1562 = vmatprep.subr.mxu0 0.0
    %1563 = vmatpush1.msra.mxu0 %v392
    %1564 = vmatprep.subr.mxu0 0.0
    %1565 = vmatpush1.msra.mxu0 %v391
    %1566 = vmatprep.subr.mxu0 0.0
    %1567 = vmatpush1.msra.mxu0 %v390
    %1568 = vmatprep.subr.mxu0 0.0
    %1569 = vmatpush2.msra.mxu0 0.0
    %1570 = vmatprep.subr.mxu0 0.0
    %1571 = vmatpush2.msra.mxu0 0.0
    %1572 = vmatprep.subr.mxu0 0.0
    %1573 = vmatpush2.msra.mxu0 0.0
    %1574 = vmatprep.subr.mxu0 0.0
    %1575 = vmatpush2.msra.mxu0 0.0
    %1576 = vmatprep.subr.mxu0 0.0
    %1577 = vmatpush2.msra.mxu0 0.0
    %1578 = vmatprep.subr.mxu0 0.0
    %1579 = vmatpush2.msra.mxu0 0.0
    %1580 = vmatprep.subr.mxu0 0.0
    %1581 = vmatpush2.msra.mxu0 0.0
    %1582 = vmatprep.subr.mxu0 0.0
    %1583 = vmatpush2.msra.mxu0 0.0
    %1584 = vmatprep.subr.mxu0 0.0
    %1585 = vmatpush2.msra.mxu0 0.0
    %1586 = vmatprep.subr.mxu0 0.0
    %1587 = vmatpush2.msra.mxu0 0.0
    %1588 = vmatprep.subr.mxu0 0.0
    %1589 = vmatpush2.msra.mxu0 0.0
    %1590 = vmatprep.subr.mxu0 0.0
    %1591 = vmatpush2.msra.mxu0 0.0
    %1592 = vmatprep.subr.mxu0 0.0
    %1593 = vmatpush2.msra.mxu0 0.0
    %1594 = vmatprep.subr.mxu0 0.0
    %1595 = vmatpush2.msra.mxu0 0.0
    %1596 = vmatprep.subr.mxu0 0.0
    %1597 = vmatpush2.msra.mxu0 0.0
    %1598 = vmatprep.subr.mxu0 0.0
    %1599 = vmatpush2.msra.mxu0 0.0
    %1600 = vmatprep.mubr.f32.mxu0 0.0
    %1601 = vmatmul.mubr.f32.gmra.mxu0 %v1534
    %v1602 = vpop.f32.mrf.mxu0
    %v1603 = vadd.f32 %v399, %v1602
    %v1604 = vpop.f32.mrf.mxu0
    %1605 = vdwg.mxu0
    %v1606 = vadd.f32 %v1530, %v1603
    %v1607 = vxor.u32 %v1606, 2147483648
    %v1608 = vmul.f32 %v1607, 1.442695
    %v1609 = vpow.pop %v1608
    %v1610 = vadd.f32 %v1609, 1.0
    %v1611 = vrcp.pop %v1610
    %v1612 = vmul.f32 1.0, %v1611
    %1614 = vrot.lane.b32.xlu0 %v1603, 64
    %v1615 = vpop.permute.xlu0 %1614
    %v1617 = vmul.f32 %v1612, %v1615
    %1619 = vrot.lane.b32.xlu0 %v1617, 64
    %v1620 = vpop.permute.xlu0 %1619
    %v1622 = vadd.f32 %v1530, %v1620
    %v1623 = vtanh.pop %v1622
    %v1624 = vsub.f32 1.0, %v1612
    %1626 = vrot.lane.b32.xlu0 %v1623, 96
    %v1627 = vpop.permute.xlu0 %1626
    %v1629 = vmul.f32 %v1624, %v1627
    %v1630 = vmul.f32 %v1612, %v1528
    %v1631 = vadd.f32 %v1629, %v1630
    %s1632 = scalar_lea.vmem [#allocation2], 24
    %v1633 = vld [vmem:[%s1632] sm:$0x3]
    %1635 = vrot.lane.b32.xlu0 %v1631, 96
    %v1636 = vpop.permute.xlu0 %1635
    %v1637 = vsel %vm32, %v1636, 0
    %1639 = vmatprep.subr.mxu0 0.0
    %1640 = vmatpush1.msra.mxu0 0.0
    %1641 = vmatprep.subr.mxu0 0.0
    %1642 = vmatpush1.msra.mxu0 0.0
    %1643 = vmatprep.subr.mxu0 0.0
    %1644 = vmatpush1.msra.mxu0 0.0
    %1645 = vmatprep.subr.mxu0 0.0
    %1646 = vmatpush1.msra.mxu0 0.0
    %1647 = vmatprep.subr.mxu0 0.0
    %1648 = vmatpush1.msra.mxu0 0.0
    %1649 = vmatprep.subr.mxu0 0.0
    %1650 = vmatpush1.msra.mxu0 0.0
    %1651 = vmatprep.subr.mxu0 0.0
    %1652 = vmatpush1.msra.mxu0 0.0
    %1653 = vmatprep.subr.mxu0 0.0
    %1654 = vmatpush1.msra.mxu0 0.0
    %1655 = vmatprep.subr.mxu0 0.0
    %1656 = vmatpush1.msra.mxu0 0.0
    %1657 = vmatprep.subr.mxu0 0.0
    %1658 = vmatpush1.msra.mxu0 0.0
    %1659 = vmatprep.subr.mxu0 0.0
    %1660 = vmatpush1.msra.mxu0 0.0
    %1661 = vmatprep.subr.mxu0 0.0
    %1662 = vmatpush1.msra.mxu0 0.0
    %1663 = vmatprep.subr.mxu0 0.0
    %1664 = vmatpush1.msra.mxu0 %v393
    %1665 = vmatprep.subr.mxu0 0.0
    %1666 = vmatpush1.msra.mxu0 %v392
    %1667 = vmatprep.subr.mxu0 0.0
    %1668 = vmatpush1.msra.mxu0 %v391
    %1669 = vmatprep.subr.mxu0 0.0
    %1670 = vmatpush1.msra.mxu0 %v390
    %1671 = vmatprep.subr.mxu0 0.0
    %1672 = vmatpush2.msra.mxu0 0.0
    %1673 = vmatprep.subr.mxu0 0.0
    %1674 = vmatpush2.msra.mxu0 0.0
    %1675 = vmatprep.subr.mxu0 0.0
    %1676 = vmatpush2.msra.mxu0 0.0
    %1677 = vmatprep.subr.mxu0 0.0
    %1678 = vmatpush2.msra.mxu0 0.0
    %1679 = vmatprep.subr.mxu0 0.0
    %1680 = vmatpush2.msra.mxu0 0.0
    %1681 = vmatprep.subr.mxu0 0.0
    %1682 = vmatpush2.msra.mxu0 0.0
    %1683 = vmatprep.subr.mxu0 0.0
    %1684 = vmatpush2.msra.mxu0 0.0
    %1685 = vmatprep.subr.mxu0 0.0
    %1686 = vmatpush2.msra.mxu0 0.0
    %1687 = vmatprep.subr.mxu0 0.0
    %1688 = vmatpush2.msra.mxu0 0.0
    %1689 = vmatprep.subr.mxu0 0.0
    %1690 = vmatpush2.msra.mxu0 0.0
    %1691 = vmatprep.subr.mxu0 0.0
    %1692 = vmatpush2.msra.mxu0 0.0
    %1693 = vmatprep.subr.mxu0 0.0
    %1694 = vmatpush2.msra.mxu0 0.0
    %1695 = vmatprep.subr.mxu0 0.0
    %1696 = vmatpush2.msra.mxu0 0.0
    %1697 = vmatprep.subr.mxu0 0.0
    %1698 = vmatpush2.msra.mxu0 0.0
    %1699 = vmatprep.subr.mxu0 0.0
    %1700 = vmatpush2.msra.mxu0 0.0
    %1701 = vmatprep.subr.mxu0 0.0
    %1702 = vmatpush2.msra.mxu0 0.0
    %1703 = vmatprep.mubr.f32.mxu0 0.0
    %1704 = vmatmul.mubr.f32.gmra.mxu0 %v1637
    %v1705 = vpop.f32.mrf.mxu0
    %v1706 = vadd.f32 %v399, %v1705
    %v1707 = vpop.f32.mrf.mxu0
    %1708 = vdwg.mxu0
    %v1709 = vadd.f32 %v1633, %v1706
    %v1710 = vxor.u32 %v1709, 2147483648
    %v1711 = vmul.f32 %v1710, 1.442695
    %v1712 = vpow.pop %v1711
    %v1713 = vadd.f32 %v1712, 1.0
    %v1714 = vrcp.pop %v1713
    %v1715 = vmul.f32 1.0, %v1714
    %1717 = vrot.lane.b32.xlu0 %v1706, 64
    %v1718 = vpop.permute.xlu0 %1717
    %v1720 = vmul.f32 %v1715, %v1718
    %1722 = vrot.lane.b32.xlu0 %v1720, 64
    %v1723 = vpop.permute.xlu0 %1722
    %v1725 = vadd.f32 %v1633, %v1723
    %v1726 = vtanh.pop %v1725
    %v1727 = vsub.f32 1.0, %v1715
    %1729 = vrot.lane.b32.xlu0 %v1726, 96
    %v1730 = vpop.permute.xlu0 %1729
    %v1732 = vmul.f32 %v1727, %v1730
    %v1733 = vmul.f32 %v1715, %v1631
    %v1734 = vadd.f32 %v1732, %v1733
    %v1735 = vld [vmem:[#allocation3 + $0xc0] sm:$0xff]
    %v1736 = vld [vmem:[#allocation3 + $0xc8] sm:$0xff]
    %v1737 = vld [vmem:[#allocation3 + $0xd0] sm:$0xff]
    %v1738 = vld [vmem:[#allocation3 + $0xd8] sm:$0xff]
    %v1739 = vld [vmem:[#allocation3 + $0x105] sm:$0x1]
    %v1740 = vld [vmem:[#allocation3 + $0x106] sm:$0x1]
    %v1741 = vld [vmem:[#allocation3 + $0x107] sm:$0x1]
    %v1742 = vld [vmem:[#allocation3 + $0xe0] sm:$0xff]
    %v1743 = vld [vmem:[#allocation3 + $0xe8] sm:$0xff]
    %v1744 = vld [vmem:[#allocation3 + $0xf0] sm:$0xff]
    %v1745 = vld [vmem:[#allocation3 + $0xf8] sm:$0xff]
    %v1746 = vld [vmem:[#allocation3 + $0x108] sm:$0x1]
    %v1747 = vlaneseq
    %v1748 = vshrl.u32 %v1747, 7
    %v1749 = vsub.s32 0, %v1748
    %v1750 = vrot.slane %v1739, %v1749
    %1752 = vrot.lane.b32.xlu0 %v1734, 96
    %v1753 = vpop.permute.xlu0 %1752
    %v1754 = vsel %vm32, %v1753, 0
    %1756 = vmatprep.subr.mxu0 0.0
    %1757 = vmatpush1.msra.mxu0 0.0
    %1758 = vmatprep.subr.mxu0 0.0
    %1759 = vmatpush1.msra.mxu0 0.0
    %1760 = vmatprep.subr.mxu0 0.0
    %1761 = vmatpush1.msra.mxu0 0.0
    %1762 = vmatprep.subr.mxu0 0.0
    %1763 = vmatpush1.msra.mxu0 0.0
    %1764 = vmatprep.subr.mxu0 0.0
    %1765 = vmatpush1.msra.mxu0 0.0
    %1766 = vmatprep.subr.mxu0 0.0
    %1767 = vmatpush1.msra.mxu0 0.0
    %1768 = vmatprep.subr.mxu0 0.0
    %1769 = vmatpush1.msra.mxu0 0.0
    %1770 = vmatprep.subr.mxu0 0.0
    %1771 = vmatpush1.msra.mxu0 0.0
    %1772 = vmatprep.subr.mxu0 0.0
    %1773 = vmatpush1.msra.mxu0 0.0
    %1774 = vmatprep.subr.mxu0 0.0
    %1775 = vmatpush1.msra.mxu0 0.0
    %1776 = vmatprep.subr.mxu0 0.0
    %1777 = vmatpush1.msra.mxu0 0.0
    %1778 = vmatprep.subr.mxu0 0.0
    %1779 = vmatpush1.msra.mxu0 0.0
    %1780 = vmatprep.subr.mxu0 0.0
    %1781 = vmatpush1.msra.mxu0 %v1738
    %1782 = vmatprep.subr.mxu0 0.0
    %1783 = vmatpush1.msra.mxu0 %v1737
    %1784 = vmatprep.subr.mxu0 0.0
    %1785 = vmatpush1.msra.mxu0 %v1736
    %1786 = vmatprep.subr.mxu0 0.0
    %1787 = vmatpush1.msra.mxu0 %v1735
    %1788 = vmatprep.subr.mxu0 0.0
    %1789 = vmatpush2.msra.mxu0 0.0
    %1790 = vmatprep.subr.mxu0 0.0
    %1791 = vmatpush2.msra.mxu0 0.0
    %1792 = vmatprep.subr.mxu0 0.0
    %1793 = vmatpush2.msra.mxu0 0.0
    %1794 = vmatprep.subr.mxu0 0.0
    %1795 = vmatpush2.msra.mxu0 0.0
    %1796 = vmatprep.subr.mxu0 0.0
    %1797 = vmatpush2.msra.mxu0 0.0
    %1798 = vmatprep.subr.mxu0 0.0
    %1799 = vmatpush2.msra.mxu0 0.0
    %1800 = vmatprep.subr.mxu0 0.0
    %1801 = vmatpush2.msra.mxu0 0.0
    %1802 = vmatprep.subr.mxu0 0.0
    %1803 = vmatpush2.msra.mxu0 0.0
    %1804 = vmatprep.subr.mxu0 0.0
    %1805 = vmatpush2.msra.mxu0 0.0
    %1806 = vmatprep.subr.mxu0 0.0
    %1807 = vmatpush2.msra.mxu0 0.0
    %1808 = vmatprep.subr.mxu0 0.0
    %1809 = vmatpush2.msra.mxu0 0.0
    %1810 = vmatprep.subr.mxu0 0.0
    %1811 = vmatpush2.msra.mxu0 0.0
    %1812 = vmatprep.subr.mxu0 0.0
    %1813 = vmatpush2.msra.mxu0 0.0
    %1814 = vmatprep.subr.mxu0 0.0
    %1815 = vmatpush2.msra.mxu0 0.0
    %1816 = vmatprep.subr.mxu0 0.0
    %1817 = vmatpush2.msra.mxu0 0.0
    %1818 = vmatprep.subr.mxu0 0.0
    %1819 = vmatpush2.msra.mxu0 0.0
    %1820 = vmatprep.mubr.f32.mxu0 0.0
    %1821 = vmatmul.mubr.f32.gmra.mxu0 %v1754
    %v1822 = vpop.f32.mrf.mxu0
    %v1823 = vadd.f32 %v1750, %v1822
    %v1824 = vpop.f32.mrf.mxu0
    %1825 = vdwg.mxu0
    %vm1826 = vcmask 254976
    %v1827 = vsel %vm1826, %v1823, 0.0
    %1828 = vadd.xlane.f32.xlu0 %v1827
    %v1829 = vpop.xlane.xlu0 %1828
    %v1830 = vmul.f32 %v1829, %v46
    %v1831 = vsub.f32 %v1823, %v1830
    %v1832 = vmul.f32 %v1831, %v1831
    %v1833 = vsel %vm1826, %v1832, 0.0
    %1834 = vadd.xlane.f32.xlu0 %v1833
    %v1835 = vpop.xlane.xlu0 %1834
    %v1836 = vmul.f32 %v1835, %v46
    %v1837 = vadd.f32 %v1836, 1e-05
    %v1838 = vrsqrt.pop %v1837
    %v1839 = vmul.f32 %v1831, %v1838
    %v1840 = vlaneseq
    %v1841 = vshrl.u32 %v1840, 7
    %v1842 = vsub.s32 0, %v1841
    %v1843 = vrot.slane %v1740, %v1842
    %v1844 = vmul.f32 %v1839, %v1843
    %v1845 = vlaneseq
    %v1846 = vshrl.u32 %v1845, 7
    %v1847 = vsub.s32 0, %v1846
    %v1848 = vrot.slane %v1741, %v1847
    %v1849 = vadd.f32 %v1844, %v1848
    %v1850 = vmul.f32 %v1849, 0.5
    %v1851 = vmul.f32 %v1849, 0.70710677
    %vm1852 = vcmp.ge.f32.partialorder %v1851, 0.0
    %v1853 = vsel %vm1852, 1.0, -1.0
    %v1854 = vand.u32 2147483647, %v1851
    %v1855 = vmul.f32 %v1854, 0.3275911
    %v1856 = vadd.f32 %v1855, 1.0
    %v1857 = vrcp.pop %v1856
    %v1858 = vmul.f32 1.0, %v1857
    %v1859 = vmul.f32 %v1858, 1.0614054
    %v1860 = vadd.f32 %v1859, -1.4531521
    %v1861 = vmul.f32 %v1860, %v1858
    %v1862 = vadd.f32 %v1861, 1.4214138
    %v1863 = vmul.f32 %v1862, %v1858
    %v1864 = vadd.f32 %v1863, -0.28449672
    %v1865 = vmul.f32 %v1864, %v1858
    %v1866 = vadd.f32 %v1865, 0.2548296
    %v1867 = vmul.f32 %v1866, %v1858
    %v1868 = vsub.f32 0.0, %v1854
    %v1869 = vmul.f32 %v1868, %v1854
    %v1870 = vmul.f32 %v1869, 1.442695
    %v1871 = vpow.pop %v1870
    %v1872 = vmul.f32 %v1867, %v1871
    %v1873 = vsub.f32 1.0, %v1872
    %v1874 = vmul.f32 %v1853, %v1873
    %v1875 = vadd.f32 %v1874, 1.0
    %v1876 = vmul.f32 %v1850, %v1875
    %v1877 = vlaneseq
    %v1878 = vshrl.u32 %v1877, 7
    %v1879 = vsub.s32 0, %v1878
    %v1880 = vrot.slane %v1746, %v1879
    %v1882 = vsel %vm32, %v1876, 0
    %1884 = vmatprep.subr.mxu0 0.0
    %1885 = vmatpush1.msra.mxu0 0.0
    %1886 = vmatprep.subr.mxu0 0.0
    %1887 = vmatpush1.msra.mxu0 0.0
    %1888 = vmatprep.subr.mxu0 0.0
    %1889 = vmatpush1.msra.mxu0 0.0
    %1890 = vmatprep.subr.mxu0 0.0
    %1891 = vmatpush1.msra.mxu0 0.0
    %1892 = vmatprep.subr.mxu0 0.0
    %1893 = vmatpush1.msra.mxu0 0.0
    %1894 = vmatprep.subr.mxu0 0.0
    %1895 = vmatpush1.msra.mxu0 0.0
    %1896 = vmatprep.subr.mxu0 0.0
    %1897 = vmatpush1.msra.mxu0 0.0
    %1898 = vmatprep.subr.mxu0 0.0
    %1899 = vmatpush1.msra.mxu0 0.0
    %1900 = vmatprep.subr.mxu0 0.0
    %1901 = vmatpush1.msra.mxu0 0.0
    %1902 = vmatprep.subr.mxu0 0.0
    %1903 = vmatpush1.msra.mxu0 0.0
    %1904 = vmatprep.subr.mxu0 0.0
    %1905 = vmatpush1.msra.mxu0 0.0
    %1906 = vmatprep.subr.mxu0 0.0
    %1907 = vmatpush1.msra.mxu0 0.0
    %1908 = vmatprep.subr.mxu0 0.0
    %1909 = vmatpush1.msra.mxu0 %v1745
    %1910 = vmatprep.subr.mxu0 0.0
    %1911 = vmatpush1.msra.mxu0 %v1744
    %1912 = vmatprep.subr.mxu0 0.0
    %1913 = vmatpush1.msra.mxu0 %v1743
    %1914 = vmatprep.subr.mxu0 0.0
    %1915 = vmatpush1.msra.mxu0 %v1742
    %1916 = vmatprep.subr.mxu0 0.0
    %1917 = vmatpush2.msra.mxu0 0.0
    %1918 = vmatprep.subr.mxu0 0.0
    %1919 = vmatpush2.msra.mxu0 0.0
    %1920 = vmatprep.subr.mxu0 0.0
    %1921 = vmatpush2.msra.mxu0 0.0
    %1922 = vmatprep.subr.mxu0 0.0
    %1923 = vmatpush2.msra.mxu0 0.0
    %1924 = vmatprep.subr.mxu0 0.0
    %1925 = vmatpush2.msra.mxu0 0.0
    %1926 = vmatprep.subr.mxu0 0.0
    %1927 = vmatpush2.msra.mxu0 0.0
    %1928 = vmatprep.subr.mxu0 0.0
    %1929 = vmatpush2.msra.mxu0 0.0
    %1930 = vmatprep.subr.mxu0 0.0
    %1931 = vmatpush2.msra.mxu0 0.0
    %1932 = vmatprep.subr.mxu0 0.0
    %1933 = vmatpush2.msra.mxu0 0.0
    %1934 = vmatprep.subr.mxu0 0.0
    %1935 = vmatpush2.msra.mxu0 0.0
    %1936 = vmatprep.subr.mxu0 0.0
    %1937 = vmatpush2.msra.mxu0 0.0
    %1938 = vmatprep.subr.mxu0 0.0
    %1939 = vmatpush2.msra.mxu0 0.0
    %1940 = vmatprep.subr.mxu0 0.0
    %1941 = vmatpush2.msra.mxu0 0.0
    %1942 = vmatprep.subr.mxu0 0.0
    %1943 = vmatpush2.msra.mxu0 0.0
    %1944 = vmatprep.subr.mxu0 0.0
    %1945 = vmatpush2.msra.mxu0 0.0
    %1946 = vmatprep.subr.mxu0 0.0
    %1947 = vmatpush2.msra.mxu0 0.0
    %1948 = vmatprep.mubr.f32.mxu0 0.0
    %1949 = vmatmul.mubr.f32.gmra.mxu0 %v1882
    %v1950 = vpop.f32.mrf.mxu0
    %v1951 = vadd.f32 %v1880, %v1950
    %v1952 = vpop.f32.mrf.mxu0
    %1953 = vdwg.mxu0
    %vm1954 = vcmask 17408
    %1955 = vst.msk [vmem:[#allocation6] sm:$0x3] %vm1954, %v1951
    // Predicated region
    $region14: #{hybrid_forward.1} parent=1 // pred_check
      _
    $region15: #{hybrid_forward.1} parent=1 // pred_check_branch
      %1957 = sbr.rel (0) target = $region17
    $region16: #{hybrid_forward.1} parent=1 // pred_region
      %s1959 = ssub.s32 32, 32
      %1960 = vsyncadd [#allocation5], %s1959
      %s1962 = sshll.u32 [#allocation6], 4
      %s1963 = int_to_ptr.vmem [resolvable:$true] %s1962
      %1965 = dma.vmem_to_hbm [thread:$0]  %s1963, 32, %s2, [#allocation5]
    $region17: #{hybrid_forward.1} parent=1 // pred_fallthru
      _
    // Predicated region
    $region18: #{hybrid_forward.1} parent=1 // pred_check
      _
    $region19: #{hybrid_forward.1} parent=1 // pred_check_branch
      %1967 = sbr.rel (0) target = $region21
    $region20: #{hybrid_forward.1} parent=1 // pred_region
      %1968 = dma.done [#allocation5], 32
    $region21: #{hybrid_forward.1} parent=1 // pred_fallthru
      _
    %1969 = vsyncpa [#allocation4], 1
    %1970 = vsyncpa [#allocation5], 1

</llo_original>
